<compile_context>
chip_gen: v7x
topology: tpu7x:2x2x1
jax: 0.10.0
libtpu: 0.0.40
codegen_flags: <defaults>
</compile_context>

<pallas_src>
import functools

import jax
import jax.numpy as jnp
from jax import lax
from jax.experimental import pallas as pl
from jax.experimental.pallas import tpu as pltpu


def _conv3x3_kernel(x_ref, w_ref, b_ref, o_ref, *, th, w_out, cin, neg_slope):
    # x_ref: (TH+2, W+2, Cin)   bf16  zero-padded input row tile (with halo)
    # w_ref: (9, Cin, TC)       bf16  per-tap weights (Cout tile)
    # b_ref: (1, TC)            f32   bias (zero-padded columns)
    # o_ref: (TH*W, TC)         f32   lane-dense output tile
    rows = th * w_out
    tc = o_ref.shape[-1]
    acc = jnp.zeros((rows, tc), dtype=jnp.float32)
    # 9-tap accumulation: static (unrolled) loop, one MXU matmul per tap.
    for kh in range(3):
        for kw in range(3):
            patch = x_ref[kh:kh + th, kw:kw + w_out, :].reshape(rows, cin)
            acc = acc + jnp.dot(patch, w_ref[kh * 3 + kw],
                                preferred_element_type=jnp.float32)
    acc = acc + b_ref[...]                      # (1, TC) broadcasts over rows
    # ReLU (neg_slope=0.0) or LeakyReLU(0.2), matching the module.
    o_ref[...] = jnp.where(acc >= 0.0, acc, neg_slope * acc).astype(o_ref.dtype)


def _pick_row_tile(h, w, max_gemm_rows=2048):
    """Largest divisor of H whose GEMM row count (TH*W) stays in budget."""
    best = 1
    for th in range(1, h + 1):
        if h % th == 0 and th * w <= max_gemm_rows:
            best = th
    return best


def _pick_cout_tile(cpad, max_tc=256):
    """Largest multiple of 128 that divides CPAD and is <= max_tc."""
    tc = 128
    for m in range(1, cpad // 128 + 1):
        cand = 128 * m
        if cand <= max_tc and cpad % cand == 0:
            tc = cand
    return tc


def conv_forward(x_nchw, weight_oihw, bias, *, act="relu",
                 row_tile=None, cout_tile=None):
    """Equivalent of Conv(in,out,3,1,1,bias=True,act).forward(x) for NCHW input."""
    N, Cin, H, W = x_nchw.shape
    Cout, Cin_w, KH, KW = weight_oihw.shape
    assert Cin == Cin_w and KH == 3 and KW == 3
    neg_slope = 0.2 if act == "lrelu" else 0.0

    TH = row_tile if row_tile is not None else _pick_row_tile(H, W)
    assert H % TH == 0, "row_tile must divide H"
    n_tiles = H // TH
    P_TILE = TH * W
    CPAD = ((Cout + 127) // 128) * 128          # lane-dense output columns
    TC = cout_tile if cout_tile is not None else _pick_cout_tile(CPAD)
    assert TC % 128 == 0 and CPAD % TC == 0
    n_ctiles = CPAD // TC

    # ---- glue: NCHW->NHWC, zero-pad, cut row tiles with a 2-row halo (bf16) ----
    x_nhwc = jnp.transpose(x_nchw, (0, 2, 3, 1))                        # (N,H,W,Cin)
    x_pad = jnp.pad(x_nhwc, ((0, 0), (1, 1), (1, 1), (0, 0))).astype(jnp.bfloat16)
    windows = jnp.stack(
        [x_pad[:, t * TH:t * TH + TH + 2] for t in range(n_tiles)], axis=1)
    windows = windows.reshape(N * n_tiles, TH + 2, W + 2, Cin)          # (G,TH+2,W+2,Cin)

    # weights (Cout,Cin,3,3) -> (3,3,Cin,Cout) -> (9,Cin,Cout) -> pad Cout, bf16
    w_taps = jnp.transpose(weight_oihw, (2, 3, 1, 0)).reshape(9, Cin, Cout)
    w_taps = jnp.pad(w_taps, ((0, 0), (0, 0), (0, CPAD - Cout))).astype(jnp.bfloat16)
    b_row = jnp.pad(bias.reshape(1, Cout).astype(jnp.float32),
                    ((0, 0), (0, CPAD - Cout)))

    # ---- explicit VMEM budget (double-buffered blocks + accumulator headroom) ----
    x_blk = (TH + 2) * (W + 2) * Cin * 2
    w_blk = 9 * Cin * TC * 2
    b_blk = TC * 4
    o_blk = P_TILE * TC * 4
    need = 2 * (x_blk + w_blk + b_blk + o_blk) + 2 * o_blk
    vmem_limit = int(min(48 * 1024 * 1024, max(4 * 1024 * 1024, 2 * need)))

    kernel = functools.partial(_conv3x3_kernel, th=TH, w_out=W, cin=Cin,
                               neg_slope=neg_slope)
    grid = (N * n_tiles, n_ctiles)
    out = pl.pallas_call(
        kernel,
        out_shape=jax.ShapeDtypeStruct((N * n_tiles, P_TILE, CPAD), jnp.float32),
        grid=grid,
        in_specs=[
            pl.BlockSpec((None, TH + 2, W + 2, Cin), lambda i, j: (i, 0, 0, 0)),
            pl.BlockSpec((9, Cin, TC), lambda i, j: (0, 0, j)),
            pl.BlockSpec((1, TC), lambda i, j: (0, j)),
        ],
        out_specs=pl.BlockSpec((None, P_TILE, TC), lambda i, j: (i, 0, j)),
        compiler_params=pltpu.CompilerParams(
            dimension_semantics=("parallel", "parallel"),
            vmem_limit_bytes=vmem_limit),
    )(windows, w_taps, b_row)

    # ---- glue: drop Cout padding, back to NCHW ----
    out = out.reshape(N, H, W, CPAD)[..., :Cout]
    return jnp.transpose(out, (0, 3, 1, 2))                             # (N,Cout,H,W)


def _reference(x_nchw, weight_oihw, bias, *, act="relu"):
    # Quantize inputs/weights through bf16 so the reference matches the
    # kernel's bf16-operand / f32-accumulate numerics exactly.
    xq = x_nchw.astype(jnp.bfloat16).astype(jnp.float32)
    wq = weight_oihw.astype(jnp.bfloat16).astype(jnp.float32)
    y = lax.conv_general_dilated(
        xq, wq, window_strides=(1, 1), padding=((1, 1), (1, 1)),
        dimension_numbers=("NCHW", "OIHW", "NCHW"),
        precision=lax.Precision.HIGHEST)
    y = y + bias[None, :, None, None]
    slope = 0.2 if act == "lrelu" else 0.0
    return jnp.where(y >= 0, y, slope * y)


if __name__ == "__main__":
    # Small shapes consistent with the module: batch=2, in_channel=4,
    # out_channel=8, spatial=16x16.
    N, Cin, Cout, H, W = 2, 4, 8, 16, 16

    key = jax.random.PRNGKey(0)
    kx, kw = jax.random.split(key)

    x = jax.random.normal(kx, (N, Cin, H, W), dtype=jnp.float32)

    # Deterministic parameter init matching the module's __init__:
    #   kaiming_normal_ (fan_in = Cin*3*3, gain = sqrt(2)), bias zeroed.
    fan_in = Cin * 3 * 3
    std = (2.0 / fan_in) ** 0.5
    weight = jax.random.normal(kw, (Cout, Cin, 3, 3), dtype=jnp.float32) * std
    bias = jnp.zeros((Cout,), dtype=jnp.float32)

    # ReLU path, row_tile=8 -> 2 spatial tiles per image (exercises tiling + halo).
    out = conv_forward(x, weight, bias, act="relu", row_tile=8)
    out = jax.block_until_ready(out)
    ref = _reference(x, weight, bias, act="relu")
    assert out.shape == (N, Cout, H, W)
    assert jnp.allclose(out, ref, atol=1e-3, rtol=1e-3), "relu conv mismatch"

    # LeakyReLU path with the default (whole-image) row tile + default Cout tile.
    out_l = conv_forward(x, weight, bias, act="lrelu")
    out_l = jax.block_until_ready(out_l)
    ref_l = _reference(x, weight, bias, act="lrelu")
    assert jnp.allclose(out_l, ref_l, atol=1e-3, rtol=1e-3), "lrelu conv mismatch"

    print("KERNEL_OK")
</pallas_src>

<mosaic_0001>
module attributes {stable_mosaic.version = 11 : i64} {
  func.func @_conv3x3_kernel(%arg0: i32, %arg1: i32, %arg2: memref<1x10x18x4xbf16, #tpu.memory_space<vmem>>, %arg3: memref<9x4x128xbf16, #tpu.memory_space<vmem>>, %arg4: memref<1x128xf32, #tpu.memory_space<vmem>>, %arg5: memref<1x128x128xf32, #tpu.memory_space<vmem>>) attributes {dimension_semantics = [#tpu.dimension_semantics<parallel>, #tpu.dimension_semantics<parallel>], iteration_bounds = array<i64: 4, 1>, scalar_prefetch = 0 : i64, scratch_operands = 0 : i64, tpu.core_type = #tpu.core_type<tc>, window_params = [{transform_indices = @transform_0, window_bounds = array<i64: 1, 10, 18, 4>}, {transform_indices = @transform_1, window_bounds = array<i64: 9, 4, 128>}, {transform_indices = @transform_2, window_bounds = array<i64: 1, 128>}, {transform_indices = @transform_3, window_bounds = array<i64: 1, 128, 128>}]} {
    %cst = arith.constant 0.000000e+00 : f32
    %0 = vector.broadcast %cst : f32 to vector<128x128xf32>
    %c0 = arith.constant 0 : index
    %c0_0 = arith.constant 0 : index
    %c0_1 = arith.constant 0 : index
    %c0_2 = arith.constant 0 : index
    %1 = vector.load %arg2[%c0, %c0_0, %c0_1, %c0_2] : memref<1x10x18x4xbf16, #tpu.memory_space<vmem>>, vector<1x8x16x4xbf16>
    %2 = vector.shape_cast %1 : vector<1x8x16x4xbf16> to vector<8x16x4xbf16>
    %3 = vector.shape_cast %2 : vector<8x16x4xbf16> to vector<128x4xbf16>
    %c0_3 = arith.constant 0 : index
    %c0_4 = arith.constant 0 : index
    %c0_5 = arith.constant 0 : index
    %4 = vector.load %arg3[%c0_3, %c0_4, %c0_5] : memref<9x4x128xbf16, #tpu.memory_space<vmem>>, vector<1x4x128xbf16>
    %5 = vector.shape_cast %4 : vector<1x4x128xbf16> to vector<4x128xbf16>
    %cst_6 = arith.constant dense<0.000000e+00> : vector<128x128xf32>
    %6 = tpu.matmul %3, %5, %cst_6 {dimension_numbers = #tpu.dot_dimension_numbers<[1], [0], [0], [1], [0, 0, 1, 1], [], []>} : vector<128x4xbf16>, vector<4x128xbf16>, vector<128x128xf32> -> vector<128x128xf32>
    %7 = arith.addf %0, %6 : vector<128x128xf32>
    %c0_7 = arith.constant 0 : index
    %c0_8 = arith.constant 0 : index
    %c1 = arith.constant 1 : index
    %c0_9 = arith.constant 0 : index
    %8 = vector.load %arg2[%c0_7, %c0_8, %c1, %c0_9] : memref<1x10x18x4xbf16, #tpu.memory_space<vmem>>, vector<1x8x16x4xbf16>
    %9 = vector.shape_cast %8 : vector<1x8x16x4xbf16> to vector<8x16x4xbf16>
    %10 = vector.shape_cast %9 : vector<8x16x4xbf16> to vector<128x4xbf16>
    %c1_10 = arith.constant 1 : index
    %c0_11 = arith.constant 0 : index
    %c0_12 = arith.constant 0 : index
    %11 = vector.load %arg3[%c1_10, %c0_11, %c0_12] : memref<9x4x128xbf16, #tpu.memory_space<vmem>>, vector<1x4x128xbf16>
    %12 = vector.shape_cast %11 : vector<1x4x128xbf16> to vector<4x128xbf16>
    %cst_13 = arith.constant dense<0.000000e+00> : vector<128x128xf32>
    %13 = tpu.matmul %10, %12, %cst_13 {dimension_numbers = #tpu.dot_dimension_numbers<[1], [0], [0], [1], [0, 0, 1, 1], [], []>} : vector<128x4xbf16>, vector<4x128xbf16>, vector<128x128xf32> -> vector<128x128xf32>
    %14 = arith.addf %7, %13 : vector<128x128xf32>
    %c0_14 = arith.constant 0 : index
    %c0_15 = arith.constant 0 : index
    %c2 = arith.constant 2 : index
    %c0_16 = arith.constant 0 : index
    %15 = vector.load %arg2[%c0_14, %c0_15, %c2, %c0_16] : memref<1x10x18x4xbf16, #tpu.memory_space<vmem>>, vector<1x8x16x4xbf16>
    %16 = vector.shape_cast %15 : vector<1x8x16x4xbf16> to vector<8x16x4xbf16>
    %17 = vector.shape_cast %16 : vector<8x16x4xbf16> to vector<128x4xbf16>
    %c2_17 = arith.constant 2 : index
    %c0_18 = arith.constant 0 : index
    %c0_19 = arith.constant 0 : index
    %18 = vector.load %arg3[%c2_17, %c0_18, %c0_19] : memref<9x4x128xbf16, #tpu.memory_space<vmem>>, vector<1x4x128xbf16>
    %19 = vector.shape_cast %18 : vector<1x4x128xbf16> to vector<4x128xbf16>
    %cst_20 = arith.constant dense<0.000000e+00> : vector<128x128xf32>
    %20 = tpu.matmul %17, %19, %cst_20 {dimension_numbers = #tpu.dot_dimension_numbers<[1], [0], [0], [1], [0, 0, 1, 1], [], []>} : vector<128x4xbf16>, vector<4x128xbf16>, vector<128x128xf32> -> vector<128x128xf32>
    %21 = arith.addf %14, %20 : vector<128x128xf32>
    %c0_21 = arith.constant 0 : index
    %c1_22 = arith.constant 1 : index
    %c0_23 = arith.constant 0 : index
    %c0_24 = arith.constant 0 : index
    %22 = vector.load %arg2[%c0_21, %c1_22, %c0_23, %c0_24] : memref<1x10x18x4xbf16, #tpu.memory_space<vmem>>, vector<1x8x16x4xbf16>
    %23 = vector.shape_cast %22 : vector<1x8x16x4xbf16> to vector<8x16x4xbf16>
    %24 = vector.shape_cast %23 : vector<8x16x4xbf16> to vector<128x4xbf16>
    %c3 = arith.constant 3 : index
    %c0_25 = arith.constant 0 : index
    %c0_26 = arith.constant 0 : index
    %25 = vector.load %arg3[%c3, %c0_25, %c0_26] : memref<9x4x128xbf16, #tpu.memory_space<vmem>>, vector<1x4x128xbf16>
    %26 = vector.shape_cast %25 : vector<1x4x128xbf16> to vector<4x128xbf16>
    %cst_27 = arith.constant dense<0.000000e+00> : vector<128x128xf32>
    %27 = tpu.matmul %24, %26, %cst_27 {dimension_numbers = #tpu.dot_dimension_numbers<[1], [0], [0], [1], [0, 0, 1, 1], [], []>} : vector<128x4xbf16>, vector<4x128xbf16>, vector<128x128xf32> -> vector<128x128xf32>
    %28 = arith.addf %21, %27 : vector<128x128xf32>
    %c0_28 = arith.constant 0 : index
    %c1_29 = arith.constant 1 : index
    %c1_30 = arith.constant 1 : index
    %c0_31 = arith.constant 0 : index
    %29 = vector.load %arg2[%c0_28, %c1_29, %c1_30, %c0_31] : memref<1x10x18x4xbf16, #tpu.memory_space<vmem>>, vector<1x8x16x4xbf16>
    %30 = vector.shape_cast %29 : vector<1x8x16x4xbf16> to vector<8x16x4xbf16>
    %31 = vector.shape_cast %30 : vector<8x16x4xbf16> to vector<128x4xbf16>
    %c4 = arith.constant 4 : index
    %c0_32 = arith.constant 0 : index
    %c0_33 = arith.constant 0 : index
    %32 = vector.load %arg3[%c4, %c0_32, %c0_33] : memref<9x4x128xbf16, #tpu.memory_space<vmem>>, vector<1x4x128xbf16>
    %33 = vector.shape_cast %32 : vector<1x4x128xbf16> to vector<4x128xbf16>
    %cst_34 = arith.constant dense<0.000000e+00> : vector<128x128xf32>
    %34 = tpu.matmul %31, %33, %cst_34 {dimension_numbers = #tpu.dot_dimension_numbers<[1], [0], [0], [1], [0, 0, 1, 1], [], []>} : vector<128x4xbf16>, vector<4x128xbf16>, vector<128x128xf32> -> vector<128x128xf32>
    %35 = arith.addf %28, %34 : vector<128x128xf32>
    %c0_35 = arith.constant 0 : index
    %c1_36 = arith.constant 1 : index
    %c2_37 = arith.constant 2 : index
    %c0_38 = arith.constant 0 : index
    %36 = vector.load %arg2[%c0_35, %c1_36, %c2_37, %c0_38] : memref<1x10x18x4xbf16, #tpu.memory_space<vmem>>, vector<1x8x16x4xbf16>
    %37 = vector.shape_cast %36 : vector<1x8x16x4xbf16> to vector<8x16x4xbf16>
    %38 = vector.shape_cast %37 : vector<8x16x4xbf16> to vector<128x4xbf16>
    %c5 = arith.constant 5 : index
    %c0_39 = arith.constant 0 : index
    %c0_40 = arith.constant 0 : index
    %39 = vector.load %arg3[%c5, %c0_39, %c0_40] : memref<9x4x128xbf16, #tpu.memory_space<vmem>>, vector<1x4x128xbf16>
    %40 = vector.shape_cast %39 : vector<1x4x128xbf16> to vector<4x128xbf16>
    %cst_41 = arith.constant dense<0.000000e+00> : vector<128x128xf32>
    %41 = tpu.matmul %38, %40, %cst_41 {dimension_numbers = #tpu.dot_dimension_numbers<[1], [0], [0], [1], [0, 0, 1, 1], [], []>} : vector<128x4xbf16>, vector<4x128xbf16>, vector<128x128xf32> -> vector<128x128xf32>
    %42 = arith.addf %35, %41 : vector<128x128xf32>
    %c0_42 = arith.constant 0 : index
    %c2_43 = arith.constant 2 : index
    %c0_44 = arith.constant 0 : index
    %c0_45 = arith.constant 0 : index
    %43 = vector.load %arg2[%c0_42, %c2_43, %c0_44, %c0_45] : memref<1x10x18x4xbf16, #tpu.memory_space<vmem>>, vector<1x8x16x4xbf16>
    %44 = vector.shape_cast %43 : vector<1x8x16x4xbf16> to vector<8x16x4xbf16>
    %45 = vector.shape_cast %44 : vector<8x16x4xbf16> to vector<128x4xbf16>
    %c6 = arith.constant 6 : index
    %c0_46 = arith.constant 0 : index
    %c0_47 = arith.constant 0 : index
    %46 = vector.load %arg3[%c6, %c0_46, %c0_47] : memref<9x4x128xbf16, #tpu.memory_space<vmem>>, vector<1x4x128xbf16>
    %47 = vector.shape_cast %46 : vector<1x4x128xbf16> to vector<4x128xbf16>
    %cst_48 = arith.constant dense<0.000000e+00> : vector<128x128xf32>
    %48 = tpu.matmul %45, %47, %cst_48 {dimension_numbers = #tpu.dot_dimension_numbers<[1], [0], [0], [1], [0, 0, 1, 1], [], []>} : vector<128x4xbf16>, vector<4x128xbf16>, vector<128x128xf32> -> vector<128x128xf32>
    %49 = arith.addf %42, %48 : vector<128x128xf32>
    %c0_49 = arith.constant 0 : index
    %c2_50 = arith.constant 2 : index
    %c1_51 = arith.constant 1 : index
    %c0_52 = arith.constant 0 : index
    %50 = vector.load %arg2[%c0_49, %c2_50, %c1_51, %c0_52] : memref<1x10x18x4xbf16, #tpu.memory_space<vmem>>, vector<1x8x16x4xbf16>
    %51 = vector.shape_cast %50 : vector<1x8x16x4xbf16> to vector<8x16x4xbf16>
    %52 = vector.shape_cast %51 : vector<8x16x4xbf16> to vector<128x4xbf16>
    %c7 = arith.constant 7 : index
    %c0_53 = arith.constant 0 : index
    %c0_54 = arith.constant 0 : index
    %53 = vector.load %arg3[%c7, %c0_53, %c0_54] : memref<9x4x128xbf16, #tpu.memory_space<vmem>>, vector<1x4x128xbf16>
    %54 = vector.shape_cast %53 : vector<1x4x128xbf16> to vector<4x128xbf16>
    %cst_55 = arith.constant dense<0.000000e+00> : vector<128x128xf32>
    %55 = tpu.matmul %52, %54, %cst_55 {dimension_numbers = #tpu.dot_dimension_numbers<[1], [0], [0], [1], [0, 0, 1, 1], [], []>} : vector<128x4xbf16>, vector<4x128xbf16>, vector<128x128xf32> -> vector<128x128xf32>
    %56 = arith.addf %49, %55 : vector<128x128xf32>
    %c0_56 = arith.constant 0 : index
    %c2_57 = arith.constant 2 : index
    %c2_58 = arith.constant 2 : index
    %c0_59 = arith.constant 0 : index
    %57 = vector.load %arg2[%c0_56, %c2_57, %c2_58, %c0_59] : memref<1x10x18x4xbf16, #tpu.memory_space<vmem>>, vector<1x8x16x4xbf16>
    %58 = vector.shape_cast %57 : vector<1x8x16x4xbf16> to vector<8x16x4xbf16>
    %59 = vector.shape_cast %58 : vector<8x16x4xbf16> to vector<128x4xbf16>
    %c8 = arith.constant 8 : index
    %c0_60 = arith.constant 0 : index
    %c0_61 = arith.constant 0 : index
    %60 = vector.load %arg3[%c8, %c0_60, %c0_61] : memref<9x4x128xbf16, #tpu.memory_space<vmem>>, vector<1x4x128xbf16>
    %61 = vector.shape_cast %60 : vector<1x4x128xbf16> to vector<4x128xbf16>
    %cst_62 = arith.constant dense<0.000000e+00> : vector<128x128xf32>
    %62 = tpu.matmul %59, %61, %cst_62 {dimension_numbers = #tpu.dot_dimension_numbers<[1], [0], [0], [1], [0, 0, 1, 1], [], []>} : vector<128x4xbf16>, vector<4x128xbf16>, vector<128x128xf32> -> vector<128x128xf32>
    %63 = arith.addf %56, %62 : vector<128x128xf32>
    %c0_63 = arith.constant 0 : index
    %c0_64 = arith.constant 0 : index
    %64 = vector.load %arg4[%c0_63, %c0_64] : memref<1x128xf32, #tpu.memory_space<vmem>>, vector<1x128xf32>
    %65 = vector.broadcast %64 : vector<1x128xf32> to vector<128x128xf32>
    %66 = arith.addf %63, %65 : vector<128x128xf32>
    %cst_65 = arith.constant 0.000000e+00 : f32
    %67 = vector.broadcast %cst_65 : f32 to vector<128x128xf32>
    %68 = arith.cmpf oge, %66, %67 : vector<128x128xf32>
    %cst_66 = arith.constant 0.000000e+00 : f32
    %69 = vector.broadcast %cst_66 : f32 to vector<128x128xf32>
    %70 = arith.mulf %69, %66 : vector<128x128xf32>
    %71 = arith.select %68, %66, %70 : vector<128x128xi1>, vector<128x128xf32>
    %c0_67 = arith.constant 0 : index
    %c0_68 = arith.constant 0 : index
    %c0_69 = arith.constant 0 : index
    %72 = vector.load %arg5[%c0_67, %c0_68, %c0_69] : memref<1x128x128xf32, #tpu.memory_space<vmem>>, vector<1x128x128xf32>
    %73 = vector.shape_cast %72 : vector<1x128x128xf32> to vector<128x128xf32>
    %74 = vector.shape_cast %71 : vector<128x128xf32> to vector<1x128x128xf32>
    tpu.vector_store %arg5[%c0_67, %c0_68, %c0_69], %74 {strides = array<i32>} : memref<1x128x128xf32, #tpu.memory_space<vmem>>, vector<1x128x128xf32>,
    return
  }
  func.func @transform_0(%arg0: i32, %arg1: i32) -> (i32, i32, i32, i32) {
    %c0_i32 = arith.constant 0 : i32
    %c0_i32_0 = arith.constant 0 : i32
    %c0_i32_1 = arith.constant 0 : i32
    %c0_i32_2 = arith.constant 0 : i32
    return %arg0, %c0_i32, %c0_i32_0, %c0_i32_1 : i32, i32, i32, i32
  }
  func.func @transform_1(%arg0: i32, %arg1: i32) -> (i32, i32, i32) {
    %c0_i32 = arith.constant 0 : i32
    %c0_i32_0 = arith.constant 0 : i32
    %c0_i32_1 = arith.constant 0 : i32
    return %c0_i32, %c0_i32_0, %arg1 : i32, i32, i32
  }
  func.func @transform_2(%arg0: i32, %arg1: i32) -> (i32, i32) {
    %c0_i32 = arith.constant 0 : i32
    %c0_i32_0 = arith.constant 0 : i32
    return %c0_i32, %arg1 : i32, i32
  }
  func.func @transform_3(%arg0: i32, %arg1: i32) -> (i32, i32, i32) {
    %c0_i32 = arith.constant 0 : i32
    %c0_i32_0 = arith.constant 0 : i32
    return %arg0, %c0_i32, %arg1 : i32, i32, i32
  }
}

</mosaic_0001>

<llo_original>
// kernel: tpu_custom_call.1
$region0: #{tpu_custom_call.1}
  #allocation0 [shape = 'u32[]', space=smem, size = 0x4, offset = 0x4, fixed_abs, tag = 'smem constant byte address 0x4 - core index']
  #allocation1 [shape = 'u32[144,128]{1,0:T(1,128)}', space=vmem, size = 0x12000, scoped, tag = 'internal scratch']
  %s0 = inlined_call_operand.vmem [shape: bf16[4,10,18,4], index: 0, kind: input, shape index: {}]
  %s1 = inlined_call_operand.vmem [shape: bf16[9,4,128], index: 1, kind: input, shape index: {}]
  %s2 = inlined_call_operand.vmem [shape: f32[1,128], index: 2, kind: input, shape index: {}]
  %s3 = inlined_call_operand.hbm [shape: f32[4,128,128], index: 3, kind: output, shape index: {}]
  %s4 = sld [smem:[#allocation0]]
  $region45: #{tpu_custom_call.1} parent=0
    _
  %s6 = ssub.s32 1, %s4
  %s7 = scalar_select 0, %s6, %s4
  $region1: #{tpu_custom_call.1} parent=0
    #allocation2 [shape = 'u8[131072]{0}', space=vmem, size = 0x20000, scoped, tag = 'output window, operand 0']
    #allocation3 [shape = 's32[2]{0}', space=sflag, size = 0x8, scoped, tag = 'scoped memory for tpu_custom_call.1']
    %8 = vsyncpa [#allocation3], 0
    %s9 = scalar_lea.sflag [#allocation3], 1
    %10 = vsyncpa %s9, 0
    loop: start=0, step=1, limit=6
    $region2: #{tpu_custom_call.1} parent=1 // loop_pre_header
      _
    $region3: #{tpu_custom_call.1} parent=1 // loop_header
      %s12 = sphi 0, %s16
      %p13 = scmp.ge.s32.totalorder %s12, 6
      %s19 = sphi 0, %s31
      %s20 = sphi 0, %s27
      %s21 = sphi 0, %s19
      %s22 = sphi 0, %s20
      %s23 = sphi 0, %s21
      %s24 = sphi 0, %s22
      %s34 = sphi 0, %s36
      %s37 = sphi 0, %s34
      %s38 = sphi 0, %s37
      %s54 = sphi 0, %s38
      %s60 = sphi 0, %s62
      %s63 = sphi 0, %s60
      %s64 = sphi 0, %s63
      %s80 = sphi 0, %s64
      %s86 = sphi 0, %s88
      %s89 = sphi 0, %s86
      %s90 = sphi 0, %s89
      %s106 = sphi 0, %s90
      %s114 = sphi 0, %s116
      %s117 = sphi 0, %s114
      %s118 = sphi 0, %s117
      %s134 = sphi 0, %s118
    $region4: #{tpu_custom_call.1} parent=1 // loop_header_branch
      %15 = sbr.rel (%p13) target = $region8
    $region5: #{tpu_custom_call.1} parent=1 // loop_body
      %s17 = ssub.s32 %s12, 1
      %s18 = ssub.s32 %s12, 2
      %s25 = sadd.s32 1, %s20
      %p26 = scmp.ge.s32.totalorder %s25, 1
      %s27 = scalar_select %p26, 0, %s25
      %s28 = sadd.s32 1, %s19
      %s29 = scalar_select %p26, %s28, %s19
      %p30 = scmp.ge.s32.totalorder %s29, 4
      %s31 = scalar_select %p30, 0, %s29
      %s32 = ssub.s32 %s19, %s31
      %p33 = scmp.eq.s32.totalorder %s32, 0
      %s35 = sadd.s32 %s34, 1
      %s36 = scalar_select %p33, %s34, %s35
      %p39 = pneg %p33
      %p40 = scmp.eq.s32.totalorder %s12, 3
      %p41 = por %p39, %p40
      %p42 = scmp.ne.s32.totalorder %s34, %s37
      %p43 = scmp.eq.s32.totalorder %s12, 0
      %p44 = por %p42, %p43
      %p45 = scmp.ne.s32.totalorder %s34, %s37
      %p46 = scmp.eq.s32.totalorder %s17, 3
      %p47 = por %p45, %p46
      %p48 = scmp.ne.s32.totalorder %s37, %s38
      %p49 = scmp.eq.s32.totalorder %s17, 0
      %p50 = por %p48, %p49
      %p51 = scmp.ne.s32.totalorder %s37, %s38
      %p52 = scmp.eq.s32.totalorder %s18, 3
      %p53 = por %p51, %p52
      %p55 = scmp.ne.s32.totalorder %s38, %s54
      %p56 = scmp.eq.s32.totalorder %s18, 0
      %p57 = por %p55, %p56
      %s58 = ssub.s32 %s20, %s27
      %p59 = scmp.eq.s32.totalorder %s58, 0
      %s61 = sadd.s32 %s60, 1
      %s62 = scalar_select %p59, %s60, %s61
      %p65 = pneg %p59
      %p66 = scmp.eq.s32.totalorder %s12, 3
      %p67 = por %p65, %p66
      %p68 = scmp.ne.s32.totalorder %s60, %s63
      %p69 = scmp.eq.s32.totalorder %s12, 0
      %p70 = por %p68, %p69
      %p71 = scmp.ne.s32.totalorder %s60, %s63
      %p72 = scmp.eq.s32.totalorder %s17, 3
      %p73 = por %p71, %p72
      %p74 = scmp.ne.s32.totalorder %s63, %s64
      %p75 = scmp.eq.s32.totalorder %s17, 0
      %p76 = por %p74, %p75
      %p77 = scmp.ne.s32.totalorder %s63, %s64
      %p78 = scmp.eq.s32.totalorder %s18, 3
      %p79 = por %p77, %p78
      %p81 = scmp.ne.s32.totalorder %s64, %s80
      %p82 = scmp.eq.s32.totalorder %s18, 0
      %p83 = por %p81, %p82
      %s84 = ssub.s32 %s20, %s27
      %p85 = scmp.eq.s32.totalorder %s84, 0
      %s87 = sadd.s32 %s86, 1
      %s88 = scalar_select %p85, %s86, %s87
      %p91 = pneg %p85
      %p92 = scmp.eq.s32.totalorder %s12, 3
      %p93 = por %p91, %p92
      %p94 = scmp.ne.s32.totalorder %s86, %s89
      %p95 = scmp.eq.s32.totalorder %s12, 0
      %p96 = por %p94, %p95
      %p97 = scmp.ne.s32.totalorder %s86, %s89
      %p98 = scmp.eq.s32.totalorder %s17, 3
      %p99 = por %p97, %p98
      %p100 = scmp.ne.s32.totalorder %s89, %s90
      %p101 = scmp.eq.s32.totalorder %s17, 0
      %p102 = por %p100, %p101
      %p103 = scmp.ne.s32.totalorder %s89, %s90
      %p104 = scmp.eq.s32.totalorder %s18, 3
      %p105 = por %p103, %p104
      %p107 = scmp.ne.s32.totalorder %s90, %s106
      %p108 = scmp.eq.s32.totalorder %s18, 0
      %p109 = por %p107, %p108
      %s110 = ssub.s32 %s19, %s31
      %s111 = ssub.s32 %s20, %s27
      %s112 = sor.u32 %s110, %s111
      %p113 = scmp.eq.s32.totalorder %s112, 0
      %s115 = sadd.s32 %s114, 1
      %s116 = scalar_select %p113, %s114, %s115
      %p119 = pneg %p113
      %p120 = scmp.eq.s32.totalorder %s12, 3
      %p121 = por %p119, %p120
      %p122 = scmp.ne.s32.totalorder %s114, %s117
      %p123 = scmp.eq.s32.totalorder %s12, 0
      %p124 = por %p122, %p123
      %p125 = scmp.ne.s32.totalorder %s114, %s117
      %p126 = scmp.eq.s32.totalorder %s17, 3
      %p127 = por %p125, %p126
      %p128 = scmp.ne.s32.totalorder %s117, %s118
      %p129 = scmp.eq.s32.totalorder %s17, 0
      %p130 = por %p128, %p129
      %p131 = scmp.ne.s32.totalorder %s117, %s118
      %p132 = scmp.eq.s32.totalorder %s18, 3
      %p133 = por %p131, %p132
      %p135 = scmp.ne.s32.totalorder %s118, %s134
      %p136 = scmp.eq.s32.totalorder %s18, 0
      %p137 = por %p135, %p136
      %p138 = scmp.le.s32.totalorder 1, %s12
      %p139 = scmp.lt.s32.totalorder %s12, 5
      %p140 = pnand %p138, %p139
      %p141 = pneg %p140
      // Predicated region
      $region9: #{tpu_custom_call.1} parent=5 // pred_check
        _
      $region10: #{tpu_custom_call.1} parent=5 // pred_check_branch
        %143 = sbr.rel (%p140) target = $region12
      $region11: #{tpu_custom_call.1} parent=5 // pred_region
        %s144 = ssub.s32 %s12, 1
        // Predicated region
        $region13: #{tpu_custom_call.1} parent=11 // pred_check
          %p145 = pneg %p76
        $region14: #{tpu_custom_call.1} parent=11 // pred_check_branch
          %147 = sbr.rel (%p145) target = $region16
        $region15: #{tpu_custom_call.1} parent=11 // pred_region
          %p148 = scmp.lt.s32.totalorder %s22, 0
          %s149 = scalar_select %p148, %s22, 0
          %s150 = smul.addr %s149, 2
          %s151 = scalar_lea.vmem %s1, %s150
        $region16: #{tpu_custom_call.1} parent=11 // pred_fallthru
          _
        // Predicated region
        $region17: #{tpu_custom_call.1} parent=11 // pred_check
          %p152 = pneg %p102
        $region18: #{tpu_custom_call.1} parent=11 // pred_check_branch
          %154 = sbr.rel (%p152) target = $region20
        $region19: #{tpu_custom_call.1} parent=11 // pred_region
          %p155 = scmp.lt.s32.totalorder %s22, 0
          %s156 = scalar_select %p155, %s22, 0
          %s157 = scalar_lea.vmem %s2, %s156
        $region20: #{tpu_custom_call.1} parent=11 // pred_fallthru
          _
      $region12: #{tpu_custom_call.1} parent=5 // pred_fallthru
        _
      %p158 = scmp.lt.s32.totalorder %s12, 4
      // Predicated region
      $region21: #{tpu_custom_call.1} parent=5 // pred_check
        %p159 = pneg %p158
      $region22: #{tpu_custom_call.1} parent=5 // pred_check_branch
        %161 = sbr.rel (%p159) target = $region24
      $region23: #{tpu_custom_call.1} parent=5 // pred_region
        // Predicated region
        $region25: #{tpu_custom_call.1} parent=23 // pred_check
          %p162 = pneg %p44
        $region26: #{tpu_custom_call.1} parent=23 // pred_check_branch
          %164 = sbr.rel (%p162) target = $region28
        $region27: #{tpu_custom_call.1} parent=23 // pred_region
          %p165 = scmp.lt.s32.totalorder %s19, 3
          %s166 = scalar_select %p165, %s19, 3
          %s167 = smul.addr %s166, 30
          %s168 = smul.addr %s167, 4
          %s169 = scalar_lea.vmem %s0, %s168
        $region28: #{tpu_custom_call.1} parent=23 // pred_fallthru
          _
      $region24: #{tpu_custom_call.1} parent=5 // pred_fallthru
        _
      %p170 = scmp.le.s32.totalorder 1, %s12
      %p171 = scmp.lt.s32.totalorder %s12, 5
      %p172 = pnand %p170, %p171
      %p173 = pneg %p172
      // Predicated region
      $region29: #{tpu_custom_call.1} parent=5 // pred_check
        _
      $region30: #{tpu_custom_call.1} parent=5 // pred_check_branch
        %175 = sbr.rel (%p172) target = $region32
      $region31: #{tpu_custom_call.1} parent=5 // pred_region
        %s176 = ssub.s32 %s12, 1
        %p177 = scmp.lt.s32.totalorder %s21, 3
        %s178 = scalar_select %p177, %s21, 3
        %s179 = smul.addr %s178, 30
        %s180 = smul.addr %s179, 4
        %s181 = scalar_lea.vmem %s0, %s180
        %p182 = pneg %p50
        %p183 = pneg %p47
        %p184 = scmp.lt.s32.totalorder %s22, 0
        %s185 = scalar_select %p184, %s22, 0
        %s186 = smul.addr %s185, 2
        %s187 = scalar_lea.vmem %s1, %s186
        %p188 = pneg %p76
        %p189 = pneg %p73
        %p190 = scmp.lt.s32.totalorder %s22, 0
        %s191 = scalar_select %p190, %s22, 0
        %s192 = scalar_lea.vmem %s2, %s191
        %p193 = pneg %p102
        %p194 = pneg %p99
        %p195 = pneg %p130
        %p196 = pneg %p127
        %s197 = sand.u32 %s117, 1
        %s198 = scalar_lea.sflag [#allocation3], %s197
        %s199 = sand.u32 %s117, 1
        %s200 = smul.addr %s199, 128
        %s201 = scalar_lea.vmem [#allocation2], %s200
        %p202 = scmp.lt.s32.totalorder %s21, 3
        %s203 = scalar_select %p202, %s21, 3
        %s204 = smul.addr %s203, 30
        %s205 = smul.addr %s204, 4
        %s206 = scalar_lea.vmem %s0, %s205
        %p207 = scmp.lt.s32.totalorder %s22, 0
        %s208 = scalar_select %p207, %s22, 0
        %s209 = smul.addr %s208, 2
        %s210 = scalar_lea.vmem %s1, %s209
        %p211 = scmp.lt.s32.totalorder %s22, 0
        %s212 = scalar_select %p211, %s22, 0
        %s213 = scalar_lea.vmem %s2, %s212
        %v215 = vld [vmem:[%s206] sm:$0xf]
        %v216 = vld [vmem:[%s206 + $0x4] sm:$0xf]
        %v217 = vld [vmem:[%s206 + $0xc] sm:$0xf]
        %v218 = vld [vmem:[%s206 + $0x10] sm:$0xf]
        %v219 = vld [vmem:[%s206 + $0x18] sm:$0xf]
        %v220 = vld [vmem:[%s206 + $0x1c] sm:$0xf]
        %v221 = vld [vmem:[%s206 + $0x24] sm:$0xf]
        %v222 = vld [vmem:[%s206 + $0x28] sm:$0xf]
        %v223 = vld [vmem:[%s206 + $0x30] sm:$0xf]
        %v224 = vld [vmem:[%s206 + $0x34] sm:$0xf]
        %v225 = vld [vmem:[%s206 + $0x3c] sm:$0xf]
        %v226 = vld [vmem:[%s206 + $0x40] sm:$0xf]
        %v227 = vld [vmem:[%s206 + $0x48] sm:$0xf]
        %v228 = vld [vmem:[%s206 + $0x4c] sm:$0xf]
        %v229 = vld [vmem:[%s206 + $0x54] sm:$0xf]
        %v230 = vld [vmem:[%s206 + $0x58] sm:$0xf]
        %v231 = vld [vmem:[%s210] sm:$0x3]
        %v232 = vld [vmem:[%s206 + $0x8] sm:$0x1]
        %v233 = vld [vmem:[%s206 + $0x14] sm:$0x1]
        %v234 = vld [vmem:[%s206 + $0x20] sm:$0x1]
        %v235 = vld [vmem:[%s206 + $0x2c] sm:$0x1]
        %v236 = vld [vmem:[%s206 + $0x38] sm:$0x1]
        %v237 = vld [vmem:[%s206 + $0x44] sm:$0x1]
        %v238 = vld [vmem:[%s206 + $0x50] sm:$0x1]
        %v239 = vld [vmem:[%s206 + $0x5c] sm:$0x1]
        %vm240 = vsmask.f32 3328
        %vm241 = vsmask.f32 7440
        %vm242 = vmor %vm240, %vm241
        %v244 = vshrl.u32 %v215, 16
        %v246 = vrot.slane %v244, 4
        %v247 = vshll.u32 %v215, 16
        %v249 = vrot.slane %v247, 5
        %v250 = vor.u32 %v246, %v249
        %v251 = vrot.slane %v250, 4
        %v253 = vshll.u32 %v216, 16
        %v255 = vrot.slane %v253, 5
        %v256 = vsel %vm242, %v251, %v255
        %v257 = vshrl.u32 %v216, 16
        %v259 = vrot.slane %v257, 4
        %v260 = vor.u32 %v259, %v255
        %v261 = vrot.slane %v260, 4
        %v263 = vshll.u32 %v232, 16
        %v265 = vrot.slane %v263, 5
        %v266 = vsel %vm242, %v261, %v265
        %v268 = vshrl.u32 %v217, 16
        %v270 = vrot.slane %v268, 4
        %v271 = vshll.u32 %v217, 16
        %v273 = vrot.slane %v271, 5
        %v274 = vor.u32 %v270, %v273
        %v275 = vrot.slane %v274, 4
        %v277 = vshll.u32 %v218, 16
        %v279 = vrot.slane %v277, 5
        %v280 = vsel %vm242, %v275, %v279
        %v281 = vshrl.u32 %v218, 16
        %v283 = vrot.slane %v281, 4
        %v284 = vor.u32 %v283, %v279
        %v285 = vrot.slane %v284, 4
        %v287 = vshll.u32 %v233, 16
        %v289 = vrot.slane %v287, 5
        %v290 = vsel %vm242, %v285, %v289
        %v292 = vshrl.u32 %v219, 16
        %v294 = vrot.slane %v292, 4
        %v295 = vshll.u32 %v219, 16
        %v297 = vrot.slane %v295, 5
        %v298 = vor.u32 %v294, %v297
        %v299 = vrot.slane %v298, 4
        %v301 = vshll.u32 %v220, 16
        %v303 = vrot.slane %v301, 5
        %v304 = vsel %vm242, %v299, %v303
        %v305 = vshrl.u32 %v220, 16
        %v307 = vrot.slane %v305, 4
        %v308 = vor.u32 %v307, %v303
        %v309 = vrot.slane %v308, 4
        %v311 = vshll.u32 %v234, 16
        %v313 = vrot.slane %v311, 5
        %v314 = vsel %vm242, %v309, %v313
        %v316 = vshrl.u32 %v221, 16
        %v318 = vrot.slane %v316, 4
        %v319 = vshll.u32 %v221, 16
        %v321 = vrot.slane %v319, 5
        %v322 = vor.u32 %v318, %v321
        %v323 = vrot.slane %v322, 4
        %v325 = vshll.u32 %v222, 16
        %v327 = vrot.slane %v325, 5
        %v328 = vsel %vm242, %v323, %v327
        %v329 = vshrl.u32 %v222, 16
        %v331 = vrot.slane %v329, 4
        %v332 = vor.u32 %v331, %v327
        %v333 = vrot.slane %v332, 4
        %v335 = vshll.u32 %v235, 16
        %v337 = vrot.slane %v335, 5
        %v338 = vsel %vm242, %v333, %v337
        %v340 = vshrl.u32 %v223, 16
        %v342 = vrot.slane %v340, 4
        %v343 = vshll.u32 %v223, 16
        %v345 = vrot.slane %v343, 5
        %v346 = vor.u32 %v342, %v345
        %v347 = vrot.slane %v346, 4
        %v349 = vshll.u32 %v224, 16
        %v351 = vrot.slane %v349, 5
        %v352 = vsel %vm242, %v347, %v351
        %v353 = vshrl.u32 %v224, 16
        %v355 = vrot.slane %v353, 4
        %v356 = vor.u32 %v355, %v351
        %v357 = vrot.slane %v356, 4
        %v359 = vshll.u32 %v236, 16
        %v361 = vrot.slane %v359, 5
        %v362 = vsel %vm242, %v357, %v361
        %v364 = vshrl.u32 %v225, 16
        %v366 = vrot.slane %v364, 4
        %v367 = vshll.u32 %v225, 16
        %v369 = vrot.slane %v367, 5
        %v370 = vor.u32 %v366, %v369
        %v371 = vrot.slane %v370, 4
        %v373 = vshll.u32 %v226, 16
        %v375 = vrot.slane %v373, 5
        %v376 = vsel %vm242, %v371, %v375
        %v377 = vshrl.u32 %v226, 16
        %v379 = vrot.slane %v377, 4
        %v380 = vor.u32 %v379, %v375
        %v381 = vrot.slane %v380, 4
        %v383 = vshll.u32 %v237, 16
        %v385 = vrot.slane %v383, 5
        %v386 = vsel %vm242, %v381, %v385
        %v388 = vshrl.u32 %v227, 16
        %v390 = vrot.slane %v388, 4
        %v391 = vshll.u32 %v227, 16
        %v393 = vrot.slane %v391, 5
        %v394 = vor.u32 %v390, %v393
        %v395 = vrot.slane %v394, 4
        %v397 = vshll.u32 %v228, 16
        %v399 = vrot.slane %v397, 5
        %v400 = vsel %vm242, %v395, %v399
        %v401 = vshrl.u32 %v228, 16
        %v403 = vrot.slane %v401, 4
        %v404 = vor.u32 %v403, %v399
        %v405 = vrot.slane %v404, 4
        %v407 = vshll.u32 %v238, 16
        %v409 = vrot.slane %v407, 5
        %v410 = vsel %vm242, %v405, %v409
        %v412 = vshrl.u32 %v229, 16
        %v414 = vrot.slane %v412, 4
        %v415 = vshll.u32 %v229, 16
        %v417 = vrot.slane %v415, 5
        %v418 = vor.u32 %v414, %v417
        %v419 = vrot.slane %v418, 4
        %v421 = vshll.u32 %v230, 16
        %v423 = vrot.slane %v421, 5
        %v424 = vsel %vm242, %v419, %v423
        %v425 = vshrl.u32 %v230, 16
        %v427 = vrot.slane %v425, 4
        %v428 = vor.u32 %v427, %v423
        %v429 = vrot.slane %v428, 4
        %v431 = vshll.u32 %v239, 16
        %v433 = vrot.slane %v431, 5
        %v434 = vsel %vm242, %v429, %v433
        %s435 = scalar_lea.vmem %s210, 2
        %v436 = vld [vmem:[%s435] sm:$0x3]
        %v437 = vunpack.c.l.b16 %v256
        %v438 = vunpack.c.l.b16 %v266
        %v439 = vunpack.c.l.b16 %v280
        %v440 = vunpack.c.l.b16 %v290
        %v441 = vunpack.c.l.b16 %v304
        %v442 = vunpack.c.l.b16 %v314
        %v443 = vunpack.c.l.b16 %v328
        %v444 = vunpack.c.l.b16 %v338
        %v445 = vunpack.c.l.b16 %v352
        %v446 = vunpack.c.l.b16 %v362
        %v447 = vunpack.c.l.b16 %v376
        %v448 = vunpack.c.l.b16 %v386
        %v449 = vunpack.c.l.b16 %v400
        %v450 = vunpack.c.l.b16 %v410
        %v451 = vunpack.c.l.b16 %v424
        %v452 = vunpack.c.l.b16 %v434
        %v453 = vpack.c.b16 %v438, %v437
        %v454 = vpack.c.b16 %v440, %v439
        %v455 = vpack.c.b16 %v442, %v441
        %v456 = vpack.c.b16 %v444, %v443
        %v457 = vpack.c.b16 %v446, %v445
        %v458 = vpack.c.b16 %v448, %v447
        %v459 = vpack.c.b16 %v450, %v449
        %v460 = vpack.c.b16 %v452, %v451
        %vm461 = vcmask 31744
        %v463 = vsel %vm461, %v453, 0
        %v466 = vsel %vm461, %v454, 0
        %v469 = vsel %vm461, %v455, 0
        %v472 = vsel %vm461, %v456, 0
        %v475 = vsel %vm461, %v457, 0
        %v478 = vsel %vm461, %v458, 0
        %v481 = vsel %vm461, %v459, 0
        %v484 = vsel %vm461, %v460, 0
        %vm486 = vcmask 1041408
        %v488 = vsel %vm486, %v436, 0
        %490 = vmatprep.subr.bf16.mxu0 0
        %491 = vmatpush1.bf16.msra.mxu0 %v488
        %492 = vmatprep.subr.bf16.mxu0 0
        %493 = vmatpush1.bf16.msra.mxu0 0
        %494 = vmatprep.subr.bf16.mxu0 0
        %495 = vmatpush1.bf16.msra.mxu0 0
        %496 = vmatprep.subr.bf16.mxu0 0
        %497 = vmatpush1.bf16.msra.mxu0 0
        %498 = vmatprep.subr.bf16.mxu0 0
        %499 = vmatpush1.bf16.msra.mxu0 0
        %500 = vmatprep.subr.bf16.mxu0 0
        %501 = vmatpush1.bf16.msra.mxu0 0
        %502 = vmatprep.subr.bf16.mxu0 0
        %503 = vmatpush1.bf16.msra.mxu0 0
        %504 = vmatprep.subr.bf16.mxu0 0
        %505 = vmatpush1.bf16.msra.mxu0 0
        %506 = vmatprep.subr.bf16.mxu0 0
        %507 = vmatpush1.bf16.msra.mxu0 0
        %508 = vmatprep.subr.bf16.mxu0 0
        %509 = vmatpush1.bf16.msra.mxu0 0
        %510 = vmatprep.subr.bf16.mxu0 0
        %511 = vmatpush1.bf16.msra.mxu0 0
        %512 = vmatprep.subr.bf16.mxu0 0
        %513 = vmatpush1.bf16.msra.mxu0 0
        %514 = vmatprep.subr.bf16.mxu0 0
        %515 = vmatpush1.bf16.msra.mxu0 0
        %516 = vmatprep.subr.bf16.mxu0 0
        %517 = vmatpush1.bf16.msra.mxu0 0
        %518 = vmatprep.subr.bf16.mxu0 0
        %519 = vmatpush1.bf16.msra.mxu0 0
        %520 = vmatprep.subr.bf16.mxu0 0
        %521 = vmatpush1.bf16.msra.mxu0 0
        %522 = vmatprep.mubr.bf16.mxu0 0
        %523 = vmatmul.mubr.bf16.gmra.mrb[0].mxu0 %v463
        %v524 = vpop.f32.mrb[0].mxu0
        %v525 = vadd.f32 0.0, %v524
        %v526 = vpop.f32.mrb[0].mxu0
        %v527 = vpop.f32.mrb[0].mxu0
        %v528 = vadd.f32 0.0, %v527
        %v529 = vpop.f32.mrb[0].mxu0
        %530 = vmatprep.mubr.bf16.mxu0 0
        %531 = vmatmul.mubr.bf16.gmra.mrb[0].mxu0 %v466
        %v532 = vpop.f32.mrb[0].mxu0
        %v533 = vadd.f32 0.0, %v532
        %v534 = vpop.f32.mrb[0].mxu0
        %v535 = vpop.f32.mrb[0].mxu0
        %v536 = vadd.f32 0.0, %v535
        %v537 = vpop.f32.mrb[0].mxu0
        %538 = vmatprep.mubr.bf16.mxu0 0
        %539 = vmatmul.mubr.bf16.gmra.mrb[0].mxu0 %v469
        %v540 = vpop.f32.mrb[0].mxu0
        %v541 = vadd.f32 0.0, %v540
        %v542 = vpop.f32.mrb[0].mxu0
        %v543 = vpop.f32.mrb[0].mxu0
        %v544 = vadd.f32 0.0, %v543
        %v545 = vpop.f32.mrb[0].mxu0
        %546 = vmatprep.mubr.bf16.mxu0 0
        %547 = vmatmul.mubr.bf16.gmra.mrb[0].mxu0 %v472
        %v548 = vpop.f32.mrb[0].mxu0
        %v549 = vadd.f32 0.0, %v548
        %v550 = vpop.f32.mrb[0].mxu0
        %v551 = vpop.f32.mrb[0].mxu0
        %v552 = vadd.f32 0.0, %v551
        %v553 = vpop.f32.mrb[0].mxu0
        %554 = vmatprep.mubr.bf16.mxu0 0
        %555 = vmatmul.mubr.bf16.gmra.mrb[0].mxu0 %v475
        %v556 = vpop.f32.mrb[0].mxu0
        %v557 = vadd.f32 0.0, %v556
        %v558 = vpop.f32.mrb[0].mxu0
        %v559 = vpop.f32.mrb[0].mxu0
        %v560 = vadd.f32 0.0, %v559
        %v561 = vpop.f32.mrb[0].mxu0
        %562 = vmatprep.mubr.bf16.mxu0 0
        %563 = vmatmul.mubr.bf16.gmra.mrb[0].mxu0 %v478
        %v564 = vpop.f32.mrb[0].mxu0
        %v565 = vadd.f32 0.0, %v564
        %v566 = vpop.f32.mrb[0].mxu0
        %v567 = vpop.f32.mrb[0].mxu0
        %v568 = vadd.f32 0.0, %v567
        %v569 = vpop.f32.mrb[0].mxu0
        %570 = vmatprep.mubr.bf16.mxu0 0
        %571 = vmatmul.mubr.bf16.gmra.mrb[0].mxu0 %v481
        %v572 = vpop.f32.mrb[0].mxu0
        %v573 = vadd.f32 0.0, %v572
        %v574 = vpop.f32.mrb[0].mxu0
        %v575 = vpop.f32.mrb[0].mxu0
        %v576 = vadd.f32 0.0, %v575
        %v577 = vpop.f32.mrb[0].mxu0
        %578 = vmatprep.mubr.bf16.mxu0 0
        %579 = vmatmul.mubr.bf16.gmra.mrb[0].mxu0 %v484
        %v580 = vpop.f32.mrb[0].mxu0
        %v581 = vadd.f32 0.0, %v580
        %v582 = vpop.f32.mrb[0].mxu0
        %v583 = vpop.f32.mrb[0].mxu0
        %v584 = vadd.f32 0.0, %v583
        %v585 = vpop.f32.mrb[0].mxu0
        %586 = vdwg.mxu0
        %v603 = vunpack.c.l.b16 %v215
        %v604 = vunpack.c.l.b16 %v216
        %v605 = vunpack.c.l.b16 %v217
        %v606 = vunpack.c.l.b16 %v218
        %v607 = vunpack.c.l.b16 %v219
        %v608 = vunpack.c.l.b16 %v220
        %v609 = vunpack.c.l.b16 %v221
        %v610 = vunpack.c.l.b16 %v222
        %v611 = vunpack.c.l.b16 %v223
        %v612 = vunpack.c.l.b16 %v224
        %v613 = vunpack.c.l.b16 %v225
        %v614 = vunpack.c.l.b16 %v226
        %v615 = vunpack.c.l.b16 %v227
        %v616 = vunpack.c.l.b16 %v228
        %v617 = vunpack.c.l.b16 %v229
        %v618 = vunpack.c.l.b16 %v230
        %v619 = vpack.c.b16 %v604, %v603
        %v620 = vpack.c.b16 %v606, %v605
        %v621 = vpack.c.b16 %v608, %v607
        %v622 = vpack.c.b16 %v610, %v609
        %v623 = vpack.c.b16 %v612, %v611
        %v624 = vpack.c.b16 %v614, %v613
        %v625 = vpack.c.b16 %v616, %v615
        %v626 = vpack.c.b16 %v618, %v617
        %v628 = vsel %vm461, %v619, 0
        %v631 = vsel %vm461, %v620, 0
        %v634 = vsel %vm461, %v621, 0
        %v637 = vsel %vm461, %v622, 0
        %v640 = vsel %vm461, %v623, 0
        %v643 = vsel %vm461, %v624, 0
        %v646 = vsel %vm461, %v625, 0
        %v649 = vsel %vm461, %v626, 0
        %v652 = vsel %vm486, %v231, 0
        %654 = vmatprep.subr.bf16.mxu0 0
        %655 = vmatpush1.bf16.msra.mxu0 %v652
        %656 = vmatprep.subr.bf16.mxu0 0
        %657 = vmatpush1.bf16.msra.mxu0 0
        %658 = vmatprep.subr.bf16.mxu0 0
        %659 = vmatpush1.bf16.msra.mxu0 0
        %660 = vmatprep.subr.bf16.mxu0 0
        %661 = vmatpush1.bf16.msra.mxu0 0
        %662 = vmatprep.subr.bf16.mxu0 0
        %663 = vmatpush1.bf16.msra.mxu0 0
        %664 = vmatprep.subr.bf16.mxu0 0
        %665 = vmatpush1.bf16.msra.mxu0 0
        %666 = vmatprep.subr.bf16.mxu0 0
        %667 = vmatpush1.bf16.msra.mxu0 0
        %668 = vmatprep.subr.bf16.mxu0 0
        %669 = vmatpush1.bf16.msra.mxu0 0
        %670 = vmatprep.subr.bf16.mxu0 0
        %671 = vmatpush1.bf16.msra.mxu0 0
        %672 = vmatprep.subr.bf16.mxu0 0
        %673 = vmatpush1.bf16.msra.mxu0 0
        %674 = vmatprep.subr.bf16.mxu0 0
        %675 = vmatpush1.bf16.msra.mxu0 0
        %676 = vmatprep.subr.bf16.mxu0 0
        %677 = vmatpush1.bf16.msra.mxu0 0
        %678 = vmatprep.subr.bf16.mxu0 0
        %679 = vmatpush1.bf16.msra.mxu0 0
        %680 = vmatprep.subr.bf16.mxu0 0
        %681 = vmatpush1.bf16.msra.mxu0 0
        %682 = vmatprep.subr.bf16.mxu0 0
        %683 = vmatpush1.bf16.msra.mxu0 0
        %684 = vmatprep.subr.bf16.mxu0 0
        %685 = vmatpush1.bf16.msra.mxu0 0
        %686 = vmatprep.mubr.bf16.mxu0 0
        %687 = vmatmul.mubr.bf16.gmra.mrb[0].mxu0 %v628
        %v688 = vpop.f32.mrb[0].mxu0
        %v689 = vadd.f32 %v525, %v688
        %v690 = vpop.f32.mrb[0].mxu0
        %v691 = vpop.f32.mrb[0].mxu0
        %v692 = vadd.f32 %v528, %v691
        %v693 = vpop.f32.mrb[0].mxu0
        %694 = vmatprep.mubr.bf16.mxu0 0
        %695 = vmatmul.mubr.bf16.gmra.mrb[0].mxu0 %v631
        %v696 = vpop.f32.mrb[0].mxu0
        %v697 = vadd.f32 %v533, %v696
        %v698 = vpop.f32.mrb[0].mxu0
        %v699 = vpop.f32.mrb[0].mxu0
        %v700 = vadd.f32 %v536, %v699
        %v701 = vpop.f32.mrb[0].mxu0
        %702 = vmatprep.mubr.bf16.mxu0 0
        %703 = vmatmul.mubr.bf16.gmra.mrb[0].mxu0 %v634
        %v704 = vpop.f32.mrb[0].mxu0
        %v705 = vadd.f32 %v541, %v704
        %v706 = vpop.f32.mrb[0].mxu0
        %v707 = vpop.f32.mrb[0].mxu0
        %v708 = vadd.f32 %v544, %v707
        %v709 = vpop.f32.mrb[0].mxu0
        %710 = vmatprep.mubr.bf16.mxu0 0
        %711 = vmatmul.mubr.bf16.gmra.mrb[0].mxu0 %v637
        %v712 = vpop.f32.mrb[0].mxu0
        %v713 = vadd.f32 %v549, %v712
        %v714 = vpop.f32.mrb[0].mxu0
        %v715 = vpop.f32.mrb[0].mxu0
        %v716 = vadd.f32 %v552, %v715
        %v717 = vpop.f32.mrb[0].mxu0
        %718 = vmatprep.mubr.bf16.mxu0 0
        %719 = vmatmul.mubr.bf16.gmra.mrb[0].mxu0 %v640
        %v720 = vpop.f32.mrb[0].mxu0
        %v721 = vadd.f32 %v557, %v720
        %v722 = vpop.f32.mrb[0].mxu0
        %v723 = vpop.f32.mrb[0].mxu0
        %v724 = vadd.f32 %v560, %v723
        %v725 = vpop.f32.mrb[0].mxu0
        %726 = vmatprep.mubr.bf16.mxu0 0
        %727 = vmatmul.mubr.bf16.gmra.mrb[0].mxu0 %v643
        %v728 = vpop.f32.mrb[0].mxu0
        %v729 = vadd.f32 %v565, %v728
        %v730 = vpop.f32.mrb[0].mxu0
        %v731 = vpop.f32.mrb[0].mxu0
        %v732 = vadd.f32 %v568, %v731
        %v733 = vpop.f32.mrb[0].mxu0
        %734 = vmatprep.mubr.bf16.mxu0 0
        %735 = vmatmul.mubr.bf16.gmra.mrb[0].mxu0 %v646
        %v736 = vpop.f32.mrb[0].mxu0
        %v737 = vadd.f32 %v573, %v736
        %v738 = vpop.f32.mrb[0].mxu0
        %v739 = vpop.f32.mrb[0].mxu0
        %v740 = vadd.f32 %v576, %v739
        %v741 = vpop.f32.mrb[0].mxu0
        %742 = vmatprep.mubr.bf16.mxu0 0
        %743 = vmatmul.mubr.bf16.gmra.mrb[0].mxu0 %v649
        %v744 = vpop.f32.mrb[0].mxu0
        %v745 = vadd.f32 %v581, %v744
        %v746 = vpop.f32.mrb[0].mxu0
        %v747 = vpop.f32.mrb[0].mxu0
        %v748 = vadd.f32 %v584, %v747
        %v749 = vpop.f32.mrb[0].mxu0
        %750 = vdwg.mxu0
        %v751 = vld [vmem:[%s206] sm:$0xe]
        %v752 = vld [vmem:[%s206 + $0xc] sm:$0xe]
        %v753 = vld [vmem:[%s206 + $0x18] sm:$0xe]
        %v754 = vld [vmem:[%s206 + $0x24] sm:$0xe]
        %v755 = vld [vmem:[%s206 + $0x30] sm:$0xe]
        %v756 = vld [vmem:[%s206 + $0x3c] sm:$0xe]
        %v757 = vld [vmem:[%s206 + $0x48] sm:$0xe]
        %v758 = vld [vmem:[%s206 + $0x54] sm:$0xe]
        %vm775 = vcmask 1042432
        %vm776 = vcmask 1046532
        %vm777 = vmor %vm775, %vm776
        %v778 = vrot.slane %v751, 5
        %v779 = vrot.slane %v778, 4
        %v780 = vrot.slane %v216, 5
        %v781 = vsel %vm777, %v779, %v780
        %v782 = vrot.slane %v780, 4
        %v783 = vrot.slane %v232, 5
        %v784 = vsel %vm777, %v782, %v783
        %v785 = vrot.slane %v752, 5
        %v786 = vrot.slane %v785, 4
        %v787 = vrot.slane %v218, 5
        %v788 = vsel %vm777, %v786, %v787
        %v789 = vrot.slane %v787, 4
        %v790 = vrot.slane %v233, 5
        %v791 = vsel %vm777, %v789, %v790
        %v792 = vrot.slane %v753, 5
        %v793 = vrot.slane %v792, 4
        %v794 = vrot.slane %v220, 5
        %v795 = vsel %vm777, %v793, %v794
        %v796 = vrot.slane %v794, 4
        %v797 = vrot.slane %v234, 5
        %v798 = vsel %vm777, %v796, %v797
        %v799 = vrot.slane %v754, 5
        %v800 = vrot.slane %v799, 4
        %v801 = vrot.slane %v222, 5
        %v802 = vsel %vm777, %v800, %v801
        %v803 = vrot.slane %v801, 4
        %v804 = vrot.slane %v235, 5
        %v805 = vsel %vm777, %v803, %v804
        %v806 = vrot.slane %v755, 5
        %v807 = vrot.slane %v806, 4
        %v808 = vrot.slane %v224, 5
        %v809 = vsel %vm777, %v807, %v808
        %v810 = vrot.slane %v808, 4
        %v811 = vrot.slane %v236, 5
        %v812 = vsel %vm777, %v810, %v811
        %v813 = vrot.slane %v756, 5
        %v814 = vrot.slane %v813, 4
        %v815 = vrot.slane %v226, 5
        %v816 = vsel %vm777, %v814, %v815
        %v817 = vrot.slane %v815, 4
        %v818 = vrot.slane %v237, 5
        %v819 = vsel %vm777, %v817, %v818
        %v820 = vrot.slane %v757, 5
        %v821 = vrot.slane %v820, 4
        %v822 = vrot.slane %v228, 5
        %v823 = vsel %vm777, %v821, %v822
        %v824 = vrot.slane %v822, 4
        %v825 = vrot.slane %v238, 5
        %v826 = vsel %vm777, %v824, %v825
        %v827 = vrot.slane %v758, 5
        %v828 = vrot.slane %v827, 4
        %v829 = vrot.slane %v230, 5
        %v830 = vsel %vm777, %v828, %v829
        %v831 = vrot.slane %v829, 4
        %v832 = vrot.slane %v239, 5
        %v833 = vsel %vm777, %v831, %v832
        %s834 = scalar_lea.vmem %s210, 4
        %v835 = vld [vmem:[%s834] sm:$0x3]
        %v836 = vunpack.c.l.b16 %v781
        %v837 = vunpack.c.l.b16 %v784
        %v838 = vunpack.c.l.b16 %v788
        %v839 = vunpack.c.l.b16 %v791
        %v840 = vunpack.c.l.b16 %v795
        %v841 = vunpack.c.l.b16 %v798
        %v842 = vunpack.c.l.b16 %v802
        %v843 = vunpack.c.l.b16 %v805
        %v844 = vunpack.c.l.b16 %v809
        %v845 = vunpack.c.l.b16 %v812
        %v846 = vunpack.c.l.b16 %v816
        %v847 = vunpack.c.l.b16 %v819
        %v848 = vunpack.c.l.b16 %v823
        %v849 = vunpack.c.l.b16 %v826
        %v850 = vunpack.c.l.b16 %v830
        %v851 = vunpack.c.l.b16 %v833
        %v852 = vpack.c.b16 %v837, %v836
        %v853 = vpack.c.b16 %v839, %v838
        %v854 = vpack.c.b16 %v841, %v840
        %v855 = vpack.c.b16 %v843, %v842
        %v856 = vpack.c.b16 %v845, %v844
        %v857 = vpack.c.b16 %v847, %v846
        %v858 = vpack.c.b16 %v849, %v848
        %v859 = vpack.c.b16 %v851, %v850
        %v861 = vsel %vm461, %v852, 0
        %v864 = vsel %vm461, %v853, 0
        %v867 = vsel %vm461, %v854, 0
        %v870 = vsel %vm461, %v855, 0
        %v873 = vsel %vm461, %v856, 0
        %v876 = vsel %vm461, %v857, 0
        %v879 = vsel %vm461, %v858, 0
        %v882 = vsel %vm461, %v859, 0
        %v885 = vsel %vm486, %v835, 0
        %887 = vmatprep.subr.bf16.mxu0 0
        %888 = vmatpush1.bf16.msra.mxu0 %v885
        %889 = vmatprep.subr.bf16.mxu0 0
        %890 = vmatpush1.bf16.msra.mxu0 0
        %891 = vmatprep.subr.bf16.mxu0 0
        %892 = vmatpush1.bf16.msra.mxu0 0
        %893 = vmatprep.subr.bf16.mxu0 0
        %894 = vmatpush1.bf16.msra.mxu0 0
        %895 = vmatprep.subr.bf16.mxu0 0
        %896 = vmatpush1.bf16.msra.mxu0 0
        %897 = vmatprep.subr.bf16.mxu0 0
        %898 = vmatpush1.bf16.msra.mxu0 0
        %899 = vmatprep.subr.bf16.mxu0 0
        %900 = vmatpush1.bf16.msra.mxu0 0
        %901 = vmatprep.subr.bf16.mxu0 0
        %902 = vmatpush1.bf16.msra.mxu0 0
        %903 = vmatprep.subr.bf16.mxu0 0
        %904 = vmatpush1.bf16.msra.mxu0 0
        %905 = vmatprep.subr.bf16.mxu0 0
        %906 = vmatpush1.bf16.msra.mxu0 0
        %907 = vmatprep.subr.bf16.mxu0 0
        %908 = vmatpush1.bf16.msra.mxu0 0
        %909 = vmatprep.subr.bf16.mxu0 0
        %910 = vmatpush1.bf16.msra.mxu0 0
        %911 = vmatprep.subr.bf16.mxu0 0
        %912 = vmatpush1.bf16.msra.mxu0 0
        %913 = vmatprep.subr.bf16.mxu0 0
        %914 = vmatpush1.bf16.msra.mxu0 0
        %915 = vmatprep.subr.bf16.mxu0 0
        %916 = vmatpush1.bf16.msra.mxu0 0
        %917 = vmatprep.subr.bf16.mxu0 0
        %918 = vmatpush1.bf16.msra.mxu0 0
        %919 = vmatprep.mubr.bf16.mxu0 0
        %920 = vmatmul.mubr.bf16.gmra.mrb[0].mxu0 %v861
        %v921 = vpop.f32.mrb[0].mxu0
        %v922 = vadd.f32 0.0, %v921
        %v923 = vpop.f32.mrb[0].mxu0
        %v924 = vpop.f32.mrb[0].mxu0
        %v925 = vadd.f32 0.0, %v924
        %v926 = vpop.f32.mrb[0].mxu0
        %927 = vmatprep.mubr.bf16.mxu0 0
        %928 = vmatmul.mubr.bf16.gmra.mrb[0].mxu0 %v864
        %v929 = vpop.f32.mrb[0].mxu0
        %v930 = vadd.f32 0.0, %v929
        %v931 = vpop.f32.mrb[0].mxu0
        %v932 = vpop.f32.mrb[0].mxu0
        %v933 = vadd.f32 0.0, %v932
        %v934 = vpop.f32.mrb[0].mxu0
        %935 = vmatprep.mubr.bf16.mxu0 0
        %936 = vmatmul.mubr.bf16.gmra.mrb[0].mxu0 %v867
        %v937 = vpop.f32.mrb[0].mxu0
        %v938 = vadd.f32 0.0, %v937
        %v939 = vpop.f32.mrb[0].mxu0
        %v940 = vpop.f32.mrb[0].mxu0
        %v941 = vadd.f32 0.0, %v940
        %v942 = vpop.f32.mrb[0].mxu0
        %943 = vmatprep.mubr.bf16.mxu0 0
        %944 = vmatmul.mubr.bf16.gmra.mrb[0].mxu0 %v870
        %v945 = vpop.f32.mrb[0].mxu0
        %v946 = vadd.f32 0.0, %v945
        %v947 = vpop.f32.mrb[0].mxu0
        %v948 = vpop.f32.mrb[0].mxu0
        %v949 = vadd.f32 0.0, %v948
        %v950 = vpop.f32.mrb[0].mxu0
        %951 = vmatprep.mubr.bf16.mxu0 0
        %952 = vmatmul.mubr.bf16.gmra.mrb[0].mxu0 %v873
        %v953 = vpop.f32.mrb[0].mxu0
        %v954 = vadd.f32 0.0, %v953
        %v955 = vpop.f32.mrb[0].mxu0
        %v956 = vpop.f32.mrb[0].mxu0
        %v957 = vadd.f32 0.0, %v956
        %v958 = vpop.f32.mrb[0].mxu0
        %959 = vmatprep.mubr.bf16.mxu0 0
        %960 = vmatmul.mubr.bf16.gmra.mrb[0].mxu0 %v876
        %v961 = vpop.f32.mrb[0].mxu0
        %v962 = vadd.f32 0.0, %v961
        %v963 = vpop.f32.mrb[0].mxu0
        %v964 = vpop.f32.mrb[0].mxu0
        %v965 = vadd.f32 0.0, %v964
        %v966 = vpop.f32.mrb[0].mxu0
        %967 = vmatprep.mubr.bf16.mxu0 0
        %968 = vmatmul.mubr.bf16.gmra.mrb[0].mxu0 %v879
        %v969 = vpop.f32.mrb[0].mxu0
        %v970 = vadd.f32 0.0, %v969
        %v971 = vpop.f32.mrb[0].mxu0
        %v972 = vpop.f32.mrb[0].mxu0
        %v973 = vadd.f32 0.0, %v972
        %v974 = vpop.f32.mrb[0].mxu0
        %975 = vmatprep.mubr.bf16.mxu0 0
        %976 = vmatmul.mubr.bf16.gmra.mrb[0].mxu0 %v882
        %v977 = vpop.f32.mrb[0].mxu0
        %v978 = vadd.f32 0.0, %v977
        %v979 = vpop.f32.mrb[0].mxu0
        %v980 = vpop.f32.mrb[0].mxu0
        %v981 = vadd.f32 0.0, %v980
        %v982 = vpop.f32.mrb[0].mxu0
        %983 = vdwg.mxu0
        %v984 = vadd.f32 %v689, %v922
        %v985 = vadd.f32 %v692, %v925
        %v986 = vadd.f32 %v697, %v930
        %v987 = vadd.f32 %v700, %v933
        %v988 = vadd.f32 %v705, %v938
        %v989 = vadd.f32 %v708, %v941
        %v990 = vadd.f32 %v713, %v946
        %v991 = vadd.f32 %v716, %v949
        %v992 = vadd.f32 %v721, %v954
        %v993 = vadd.f32 %v724, %v957
        %v994 = vadd.f32 %v729, %v962
        %v995 = vadd.f32 %v732, %v965
        %v996 = vadd.f32 %v737, %v970
        %v997 = vadd.f32 %v740, %v973
        %v998 = vadd.f32 %v745, %v978
        %v999 = vadd.f32 %v748, %v981
        %s1000 = scalar_lea.vmem %s206, 12
        %v1001 = vld [vmem:[%s1000] sm:$0xf]
        %v1002 = vld [vmem:[%s1000 + $0x4] sm:$0xf]
        %v1003 = vld [vmem:[%s1000 + $0xc] sm:$0xf]
        %v1004 = vld [vmem:[%s1000 + $0x10] sm:$0xf]
        %v1005 = vld [vmem:[%s1000 + $0x18] sm:$0xf]
        %v1006 = vld [vmem:[%s1000 + $0x1c] sm:$0xf]
        %v1007 = vld [vmem:[%s1000 + $0x24] sm:$0xf]
        %v1008 = vld [vmem:[%s1000 + $0x28] sm:$0xf]
        %v1009 = vld [vmem:[%s1000 + $0x30] sm:$0xf]
        %v1010 = vld [vmem:[%s1000 + $0x34] sm:$0xf]
        %v1011 = vld [vmem:[%s1000 + $0x3c] sm:$0xf]
        %v1012 = vld [vmem:[%s1000 + $0x40] sm:$0xf]
        %v1013 = vld [vmem:[%s1000 + $0x48] sm:$0xf]
        %v1014 = vld [vmem:[%s1000 + $0x4c] sm:$0xf]
        %v1015 = vld [vmem:[%s1000 + $0x54] sm:$0xf]
        %v1016 = vld [vmem:[%s1000 + $0x58] sm:$0xf]
        %s1017 = scalar_lea.vmem %s210, 6
        %v1018 = vld [vmem:[%s1017] sm:$0x3]
        %v1035 = vunpack.c.l.b16 %v1001
        %v1036 = vunpack.c.l.b16 %v1002
        %v1037 = vunpack.c.l.b16 %v1003
        %v1038 = vunpack.c.l.b16 %v1004
        %v1039 = vunpack.c.l.b16 %v1005
        %v1040 = vunpack.c.l.b16 %v1006
        %v1041 = vunpack.c.l.b16 %v1007
        %v1042 = vunpack.c.l.b16 %v1008
        %v1043 = vunpack.c.l.b16 %v1009
        %v1044 = vunpack.c.l.b16 %v1010
        %v1045 = vunpack.c.l.b16 %v1011
        %v1046 = vunpack.c.l.b16 %v1012
        %v1047 = vunpack.c.l.b16 %v1013
        %v1048 = vunpack.c.l.b16 %v1014
        %v1049 = vunpack.c.l.b16 %v1015
        %v1050 = vunpack.c.l.b16 %v1016
        %v1051 = vpack.c.b16 %v1036, %v1035
        %v1052 = vpack.c.b16 %v1038, %v1037
        %v1053 = vpack.c.b16 %v1040, %v1039
        %v1054 = vpack.c.b16 %v1042, %v1041
        %v1055 = vpack.c.b16 %v1044, %v1043
        %v1056 = vpack.c.b16 %v1046, %v1045
        %v1057 = vpack.c.b16 %v1048, %v1047
        %v1058 = vpack.c.b16 %v1050, %v1049
        %v1060 = vsel %vm461, %v1051, 0
        %v1063 = vsel %vm461, %v1052, 0
        %v1066 = vsel %vm461, %v1053, 0
        %v1069 = vsel %vm461, %v1054, 0
        %v1072 = vsel %vm461, %v1055, 0
        %v1075 = vsel %vm461, %v1056, 0
        %v1078 = vsel %vm461, %v1057, 0
        %v1081 = vsel %vm461, %v1058, 0
        %v1084 = vsel %vm486, %v1018, 0
        %1086 = vmatprep.subr.bf16.mxu0 0
        %1087 = vmatpush1.bf16.msra.mxu0 %v1084
        %1088 = vmatprep.subr.bf16.mxu0 0
        %1089 = vmatpush1.bf16.msra.mxu0 0
        %1090 = vmatprep.subr.bf16.mxu0 0
        %1091 = vmatpush1.bf16.msra.mxu0 0
        %1092 = vmatprep.subr.bf16.mxu0 0
        %1093 = vmatpush1.bf16.msra.mxu0 0
        %1094 = vmatprep.subr.bf16.mxu0 0
        %1095 = vmatpush1.bf16.msra.mxu0 0
        %1096 = vmatprep.subr.bf16.mxu0 0
        %1097 = vmatpush1.bf16.msra.mxu0 0
        %1098 = vmatprep.subr.bf16.mxu0 0
        %1099 = vmatpush1.bf16.msra.mxu0 0
        %1100 = vmatprep.subr.bf16.mxu0 0
        %1101 = vmatpush1.bf16.msra.mxu0 0
        %1102 = vmatprep.subr.bf16.mxu0 0
        %1103 = vmatpush1.bf16.msra.mxu0 0
        %1104 = vmatprep.subr.bf16.mxu0 0
        %1105 = vmatpush1.bf16.msra.mxu0 0
        %1106 = vmatprep.subr.bf16.mxu0 0
        %1107 = vmatpush1.bf16.msra.mxu0 0
        %1108 = vmatprep.subr.bf16.mxu0 0
        %1109 = vmatpush1.bf16.msra.mxu0 0
        %1110 = vmatprep.subr.bf16.mxu0 0
        %1111 = vmatpush1.bf16.msra.mxu0 0
        %1112 = vmatprep.subr.bf16.mxu0 0
        %1113 = vmatpush1.bf16.msra.mxu0 0
        %1114 = vmatprep.subr.bf16.mxu0 0
        %1115 = vmatpush1.bf16.msra.mxu0 0
        %1116 = vmatprep.subr.bf16.mxu0 0
        %1117 = vmatpush1.bf16.msra.mxu0 0
        %1118 = vmatprep.mubr.bf16.mxu0 0
        %1119 = vmatmul.mubr.bf16.gmra.mrb[0].mxu0 %v1060
        %v1120 = vpop.f32.mrb[0].mxu0
        %v1121 = vadd.f32 0.0, %v1120
        %v1122 = vpop.f32.mrb[0].mxu0
        %v1123 = vpop.f32.mrb[0].mxu0
        %v1124 = vadd.f32 0.0, %v1123
        %v1125 = vpop.f32.mrb[0].mxu0
        %1126 = vmatprep.mubr.bf16.mxu0 0
        %1127 = vmatmul.mubr.bf16.gmra.mrb[0].mxu0 %v1063
        %v1128 = vpop.f32.mrb[0].mxu0
        %v1129 = vadd.f32 0.0, %v1128
        %v1130 = vpop.f32.mrb[0].mxu0
        %v1131 = vpop.f32.mrb[0].mxu0
        %v1132 = vadd.f32 0.0, %v1131
        %v1133 = vpop.f32.mrb[0].mxu0
        %1134 = vmatprep.mubr.bf16.mxu0 0
        %1135 = vmatmul.mubr.bf16.gmra.mrb[0].mxu0 %v1066
        %v1136 = vpop.f32.mrb[0].mxu0
        %v1137 = vadd.f32 0.0, %v1136
        %v1138 = vpop.f32.mrb[0].mxu0
        %v1139 = vpop.f32.mrb[0].mxu0
        %v1140 = vadd.f32 0.0, %v1139
        %v1141 = vpop.f32.mrb[0].mxu0
        %1142 = vmatprep.mubr.bf16.mxu0 0
        %1143 = vmatmul.mubr.bf16.gmra.mrb[0].mxu0 %v1069
        %v1144 = vpop.f32.mrb[0].mxu0
        %v1145 = vadd.f32 0.0, %v1144
        %v1146 = vpop.f32.mrb[0].mxu0
        %v1147 = vpop.f32.mrb[0].mxu0
        %v1148 = vadd.f32 0.0, %v1147
        %v1149 = vpop.f32.mrb[0].mxu0
        %1150 = vmatprep.mubr.bf16.mxu0 0
        %1151 = vmatmul.mubr.bf16.gmra.mrb[0].mxu0 %v1072
        %v1152 = vpop.f32.mrb[0].mxu0
        %v1153 = vadd.f32 0.0, %v1152
        %v1154 = vpop.f32.mrb[0].mxu0
        %v1155 = vpop.f32.mrb[0].mxu0
        %v1156 = vadd.f32 0.0, %v1155
        %v1157 = vpop.f32.mrb[0].mxu0
        %1158 = vmatprep.mubr.bf16.mxu0 0
        %1159 = vmatmul.mubr.bf16.gmra.mrb[0].mxu0 %v1075
        %v1160 = vpop.f32.mrb[0].mxu0
        %v1161 = vadd.f32 0.0, %v1160
        %v1162 = vpop.f32.mrb[0].mxu0
        %v1163 = vpop.f32.mrb[0].mxu0
        %v1164 = vadd.f32 0.0, %v1163
        %v1165 = vpop.f32.mrb[0].mxu0
        %1166 = vmatprep.mubr.bf16.mxu0 0
        %1167 = vmatmul.mubr.bf16.gmra.mrb[0].mxu0 %v1078
        %v1168 = vpop.f32.mrb[0].mxu0
        %v1169 = vadd.f32 0.0, %v1168
        %v1170 = vpop.f32.mrb[0].mxu0
        %v1171 = vpop.f32.mrb[0].mxu0
        %v1172 = vadd.f32 0.0, %v1171
        %v1173 = vpop.f32.mrb[0].mxu0
        %1174 = vmatprep.mubr.bf16.mxu0 0
        %1175 = vmatmul.mubr.bf16.gmra.mrb[0].mxu0 %v1081
        %v1176 = vpop.f32.mrb[0].mxu0
        %v1177 = vadd.f32 0.0, %v1176
        %v1178 = vpop.f32.mrb[0].mxu0
        %v1179 = vpop.f32.mrb[0].mxu0
        %v1180 = vadd.f32 0.0, %v1179
        %v1181 = vpop.f32.mrb[0].mxu0
        %1182 = vdwg.mxu0
        %v1183 = vadd.f32 %v984, %v1121
        %v1184 = vadd.f32 %v985, %v1124
        %v1185 = vadd.f32 %v986, %v1129
        %v1186 = vadd.f32 %v987, %v1132
        %v1187 = vadd.f32 %v988, %v1137
        %v1188 = vadd.f32 %v989, %v1140
        %v1189 = vadd.f32 %v990, %v1145
        %v1190 = vadd.f32 %v991, %v1148
        %v1191 = vadd.f32 %v992, %v1153
        %v1192 = vadd.f32 %v993, %v1156
        %v1193 = vadd.f32 %v994, %v1161
        %v1194 = vadd.f32 %v995, %v1164
        %v1195 = vadd.f32 %v996, %v1169
        %v1196 = vadd.f32 %v997, %v1172
        %v1197 = vadd.f32 %v998, %v1177
        %v1198 = vadd.f32 %v999, %v1180
        %v1199 = vld [vmem:[%s1000] sm:$0xf]
        %v1200 = vld [vmem:[%s1000 + $0x4] sm:$0xf]
        %v1201 = vld [vmem:[%s1000 + $0x8] sm:$0x1]
        %v1202 = vld [vmem:[%s1000 + $0xc] sm:$0xf]
        %v1203 = vld [vmem:[%s1000 + $0x10] sm:$0xf]
        %v1204 = vld [vmem:[%s1000 + $0x14] sm:$0x1]
        %v1205 = vld [vmem:[%s1000 + $0x18] sm:$0xf]
        %v1206 = vld [vmem:[%s1000 + $0x1c] sm:$0xf]
        %v1207 = vld [vmem:[%s1000 + $0x20] sm:$0x1]
        %v1208 = vld [vmem:[%s1000 + $0x24] sm:$0xf]
        %v1209 = vld [vmem:[%s1000 + $0x28] sm:$0xf]
        %v1210 = vld [vmem:[%s1000 + $0x2c] sm:$0x1]
        %v1211 = vld [vmem:[%s1000 + $0x30] sm:$0xf]
        %v1212 = vld [vmem:[%s1000 + $0x34] sm:$0xf]
        %v1213 = vld [vmem:[%s1000 + $0x38] sm:$0x1]
        %v1214 = vld [vmem:[%s1000 + $0x3c] sm:$0xf]
        %v1215 = vld [vmem:[%s1000 + $0x40] sm:$0xf]
        %v1216 = vld [vmem:[%s1000 + $0x44] sm:$0x1]
        %v1217 = vld [vmem:[%s1000 + $0x48] sm:$0xf]
        %v1218 = vld [vmem:[%s1000 + $0x4c] sm:$0xf]
        %v1219 = vld [vmem:[%s1000 + $0x50] sm:$0x1]
        %v1220 = vld [vmem:[%s1000 + $0x54] sm:$0xf]
        %v1221 = vld [vmem:[%s1000 + $0x58] sm:$0xf]
        %v1222 = vld [vmem:[%s1000 + $0x5c] sm:$0x1]
        %v1224 = vshrl.u32 %v1199, 16
        %v1226 = vrot.slane %v1224, 4
        %v1227 = vshll.u32 %v1199, 16
        %v1229 = vrot.slane %v1227, 5
        %v1230 = vor.u32 %v1226, %v1229
        %v1231 = vrot.slane %v1230, 4
        %v1233 = vshll.u32 %v1200, 16
        %v1235 = vrot.slane %v1233, 5
        %v1236 = vsel %vm242, %v1231, %v1235
        %v1237 = vshrl.u32 %v1200, 16
        %v1239 = vrot.slane %v1237, 4
        %v1240 = vor.u32 %v1239, %v1235
        %v1241 = vrot.slane %v1240, 4
        %v1243 = vshll.u32 %v1201, 16
        %v1245 = vrot.slane %v1243, 5
        %v1246 = vsel %vm242, %v1241, %v1245
        %v1248 = vshrl.u32 %v1202, 16
        %v1250 = vrot.slane %v1248, 4
        %v1251 = vshll.u32 %v1202, 16
        %v1253 = vrot.slane %v1251, 5
        %v1254 = vor.u32 %v1250, %v1253
        %v1255 = vrot.slane %v1254, 4
        %v1257 = vshll.u32 %v1203, 16
        %v1259 = vrot.slane %v1257, 5
        %v1260 = vsel %vm242, %v1255, %v1259
        %v1261 = vshrl.u32 %v1203, 16
        %v1263 = vrot.slane %v1261, 4
        %v1264 = vor.u32 %v1263, %v1259
        %v1265 = vrot.slane %v1264, 4
        %v1267 = vshll.u32 %v1204, 16
        %v1269 = vrot.slane %v1267, 5
        %v1270 = vsel %vm242, %v1265, %v1269
        %v1272 = vshrl.u32 %v1205, 16
        %v1274 = vrot.slane %v1272, 4
        %v1275 = vshll.u32 %v1205, 16
        %v1277 = vrot.slane %v1275, 5
        %v1278 = vor.u32 %v1274, %v1277
        %v1279 = vrot.slane %v1278, 4
        %v1281 = vshll.u32 %v1206, 16
        %v1283 = vrot.slane %v1281, 5
        %v1284 = vsel %vm242, %v1279, %v1283
        %v1285 = vshrl.u32 %v1206, 16
        %v1287 = vrot.slane %v1285, 4
        %v1288 = vor.u32 %v1287, %v1283
        %v1289 = vrot.slane %v1288, 4
        %v1291 = vshll.u32 %v1207, 16
        %v1293 = vrot.slane %v1291, 5
        %v1294 = vsel %vm242, %v1289, %v1293
        %v1296 = vshrl.u32 %v1208, 16
        %v1298 = vrot.slane %v1296, 4
        %v1299 = vshll.u32 %v1208, 16
        %v1301 = vrot.slane %v1299, 5
        %v1302 = vor.u32 %v1298, %v1301
        %v1303 = vrot.slane %v1302, 4
        %v1305 = vshll.u32 %v1209, 16
        %v1307 = vrot.slane %v1305, 5
        %v1308 = vsel %vm242, %v1303, %v1307
        %v1309 = vshrl.u32 %v1209, 16
        %v1311 = vrot.slane %v1309, 4
        %v1312 = vor.u32 %v1311, %v1307
        %v1313 = vrot.slane %v1312, 4
        %v1315 = vshll.u32 %v1210, 16
        %v1317 = vrot.slane %v1315, 5
        %v1318 = vsel %vm242, %v1313, %v1317
        %v1320 = vshrl.u32 %v1211, 16
        %v1322 = vrot.slane %v1320, 4
        %v1323 = vshll.u32 %v1211, 16
        %v1325 = vrot.slane %v1323, 5
        %v1326 = vor.u32 %v1322, %v1325
        %v1327 = vrot.slane %v1326, 4
        %v1329 = vshll.u32 %v1212, 16
        %v1331 = vrot.slane %v1329, 5
        %v1332 = vsel %vm242, %v1327, %v1331
        %v1333 = vshrl.u32 %v1212, 16
        %v1335 = vrot.slane %v1333, 4
        %v1336 = vor.u32 %v1335, %v1331
        %v1337 = vrot.slane %v1336, 4
        %v1339 = vshll.u32 %v1213, 16
        %v1341 = vrot.slane %v1339, 5
        %v1342 = vsel %vm242, %v1337, %v1341
        %v1344 = vshrl.u32 %v1214, 16
        %v1346 = vrot.slane %v1344, 4
        %v1347 = vshll.u32 %v1214, 16
        %v1349 = vrot.slane %v1347, 5
        %v1350 = vor.u32 %v1346, %v1349
        %v1351 = vrot.slane %v1350, 4
        %v1353 = vshll.u32 %v1215, 16
        %v1355 = vrot.slane %v1353, 5
        %v1356 = vsel %vm242, %v1351, %v1355
        %v1357 = vshrl.u32 %v1215, 16
        %v1359 = vrot.slane %v1357, 4
        %v1360 = vor.u32 %v1359, %v1355
        %v1361 = vrot.slane %v1360, 4
        %v1363 = vshll.u32 %v1216, 16
        %v1365 = vrot.slane %v1363, 5
        %v1366 = vsel %vm242, %v1361, %v1365
        %v1368 = vshrl.u32 %v1217, 16
        %v1370 = vrot.slane %v1368, 4
        %v1371 = vshll.u32 %v1217, 16
        %v1373 = vrot.slane %v1371, 5
        %v1374 = vor.u32 %v1370, %v1373
        %v1375 = vrot.slane %v1374, 4
        %v1377 = vshll.u32 %v1218, 16
        %v1379 = vrot.slane %v1377, 5
        %v1380 = vsel %vm242, %v1375, %v1379
        %v1381 = vshrl.u32 %v1218, 16
        %v1383 = vrot.slane %v1381, 4
        %v1384 = vor.u32 %v1383, %v1379
        %v1385 = vrot.slane %v1384, 4
        %v1387 = vshll.u32 %v1219, 16
        %v1389 = vrot.slane %v1387, 5
        %v1390 = vsel %vm242, %v1385, %v1389
        %v1392 = vshrl.u32 %v1220, 16
        %v1394 = vrot.slane %v1392, 4
        %v1395 = vshll.u32 %v1220, 16
        %v1397 = vrot.slane %v1395, 5
        %v1398 = vor.u32 %v1394, %v1397
        %v1399 = vrot.slane %v1398, 4
        %v1401 = vshll.u32 %v1221, 16
        %v1403 = vrot.slane %v1401, 5
        %v1404 = vsel %vm242, %v1399, %v1403
        %v1405 = vshrl.u32 %v1221, 16
        %v1407 = vrot.slane %v1405, 4
        %v1408 = vor.u32 %v1407, %v1403
        %v1409 = vrot.slane %v1408, 4
        %v1411 = vshll.u32 %v1222, 16
        %v1413 = vrot.slane %v1411, 5
        %v1414 = vsel %vm242, %v1409, %v1413
        %s1415 = scalar_lea.vmem %s210, 8
        %v1416 = vld [vmem:[%s1415] sm:$0x3]
        %v1417 = vunpack.c.l.b16 %v1236
        %v1418 = vunpack.c.l.b16 %v1246
        %v1419 = vunpack.c.l.b16 %v1260
        %v1420 = vunpack.c.l.b16 %v1270
        %v1421 = vunpack.c.l.b16 %v1284
        %v1422 = vunpack.c.l.b16 %v1294
        %v1423 = vunpack.c.l.b16 %v1308
        %v1424 = vunpack.c.l.b16 %v1318
        %v1425 = vunpack.c.l.b16 %v1332
        %v1426 = vunpack.c.l.b16 %v1342
        %v1427 = vunpack.c.l.b16 %v1356
        %v1428 = vunpack.c.l.b16 %v1366
        %v1429 = vunpack.c.l.b16 %v1380
        %v1430 = vunpack.c.l.b16 %v1390
        %v1431 = vunpack.c.l.b16 %v1404
        %v1432 = vunpack.c.l.b16 %v1414
        %v1433 = vpack.c.b16 %v1418, %v1417
        %v1434 = vpack.c.b16 %v1420, %v1419
        %v1435 = vpack.c.b16 %v1422, %v1421
        %v1436 = vpack.c.b16 %v1424, %v1423
        %v1437 = vpack.c.b16 %v1426, %v1425
        %v1438 = vpack.c.b16 %v1428, %v1427
        %v1439 = vpack.c.b16 %v1430, %v1429
        %v1440 = vpack.c.b16 %v1432, %v1431
        %v1442 = vsel %vm461, %v1433, 0
        %v1445 = vsel %vm461, %v1434, 0
        %v1448 = vsel %vm461, %v1435, 0
        %v1451 = vsel %vm461, %v1436, 0
        %v1454 = vsel %vm461, %v1437, 0
        %v1457 = vsel %vm461, %v1438, 0
        %v1460 = vsel %vm461, %v1439, 0
        %v1463 = vsel %vm461, %v1440, 0
        %v1466 = vsel %vm486, %v1416, 0
        %1468 = vmatprep.subr.bf16.mxu0 0
        %1469 = vmatpush1.bf16.msra.mxu0 %v1466
        %1470 = vmatprep.subr.bf16.mxu0 0
        %1471 = vmatpush1.bf16.msra.mxu0 0
        %1472 = vmatprep.subr.bf16.mxu0 0
        %1473 = vmatpush1.bf16.msra.mxu0 0
        %1474 = vmatprep.subr.bf16.mxu0 0
        %1475 = vmatpush1.bf16.msra.mxu0 0
        %1476 = vmatprep.subr.bf16.mxu0 0
        %1477 = vmatpush1.bf16.msra.mxu0 0
        %1478 = vmatprep.subr.bf16.mxu0 0
        %1479 = vmatpush1.bf16.msra.mxu0 0
        %1480 = vmatprep.subr.bf16.mxu0 0
        %1481 = vmatpush1.bf16.msra.mxu0 0
        %1482 = vmatprep.subr.bf16.mxu0 0
        %1483 = vmatpush1.bf16.msra.mxu0 0
        %1484 = vmatprep.subr.bf16.mxu0 0
        %1485 = vmatpush1.bf16.msra.mxu0 0
        %1486 = vmatprep.subr.bf16.mxu0 0
        %1487 = vmatpush1.bf16.msra.mxu0 0
        %1488 = vmatprep.subr.bf16.mxu0 0
        %1489 = vmatpush1.bf16.msra.mxu0 0
        %1490 = vmatprep.subr.bf16.mxu0 0
        %1491 = vmatpush1.bf16.msra.mxu0 0
        %1492 = vmatprep.subr.bf16.mxu0 0
        %1493 = vmatpush1.bf16.msra.mxu0 0
        %1494 = vmatprep.subr.bf16.mxu0 0
        %1495 = vmatpush1.bf16.msra.mxu0 0
        %1496 = vmatprep.subr.bf16.mxu0 0
        %1497 = vmatpush1.bf16.msra.mxu0 0
        %1498 = vmatprep.subr.bf16.mxu0 0
        %1499 = vmatpush1.bf16.msra.mxu0 0
        %1500 = vmatprep.mubr.bf16.mxu0 0
        %1501 = vmatmul.mubr.bf16.gmra.mrb[0].mxu0 %v1442
        %v1502 = vpop.f32.mrb[0].mxu0
        %v1503 = vadd.f32 0.0, %v1502
        %v1504 = vpop.f32.mrb[0].mxu0
        %v1505 = vpop.f32.mrb[0].mxu0
        %v1506 = vadd.f32 0.0, %v1505
        %v1507 = vpop.f32.mrb[0].mxu0
        %1508 = vmatprep.mubr.bf16.mxu0 0
        %1509 = vmatmul.mubr.bf16.gmra.mrb[0].mxu0 %v1445
        %v1510 = vpop.f32.mrb[0].mxu0
        %v1511 = vadd.f32 0.0, %v1510
        %v1512 = vpop.f32.mrb[0].mxu0
        %v1513 = vpop.f32.mrb[0].mxu0
        %v1514 = vadd.f32 0.0, %v1513
        %v1515 = vpop.f32.mrb[0].mxu0
        %1516 = vmatprep.mubr.bf16.mxu0 0
        %1517 = vmatmul.mubr.bf16.gmra.mrb[0].mxu0 %v1448
        %v1518 = vpop.f32.mrb[0].mxu0
        %v1519 = vadd.f32 0.0, %v1518
        %v1520 = vpop.f32.mrb[0].mxu0
        %v1521 = vpop.f32.mrb[0].mxu0
        %v1522 = vadd.f32 0.0, %v1521
        %v1523 = vpop.f32.mrb[0].mxu0
        %1524 = vmatprep.mubr.bf16.mxu0 0
        %1525 = vmatmul.mubr.bf16.gmra.mrb[0].mxu0 %v1451
        %v1526 = vpop.f32.mrb[0].mxu0
        %v1527 = vadd.f32 0.0, %v1526
        %v1528 = vpop.f32.mrb[0].mxu0
        %v1529 = vpop.f32.mrb[0].mxu0
        %v1530 = vadd.f32 0.0, %v1529
        %v1531 = vpop.f32.mrb[0].mxu0
        %1532 = vmatprep.mubr.bf16.mxu0 0
        %1533 = vmatmul.mubr.bf16.gmra.mrb[0].mxu0 %v1454
        %v1534 = vpop.f32.mrb[0].mxu0
        %v1535 = vadd.f32 0.0, %v1534
        %v1536 = vpop.f32.mrb[0].mxu0
        %v1537 = vpop.f32.mrb[0].mxu0
        %v1538 = vadd.f32 0.0, %v1537
        %v1539 = vpop.f32.mrb[0].mxu0
        %1540 = vmatprep.mubr.bf16.mxu0 0
        %1541 = vmatmul.mubr.bf16.gmra.mrb[0].mxu0 %v1457
        %v1542 = vpop.f32.mrb[0].mxu0
        %v1543 = vadd.f32 0.0, %v1542
        %v1544 = vpop.f32.mrb[0].mxu0
        %v1545 = vpop.f32.mrb[0].mxu0
        %v1546 = vadd.f32 0.0, %v1545
        %v1547 = vpop.f32.mrb[0].mxu0
        %1548 = vmatprep.mubr.bf16.mxu0 0
        %1549 = vmatmul.mubr.bf16.gmra.mrb[0].mxu0 %v1460
        %v1550 = vpop.f32.mrb[0].mxu0
        %v1551 = vadd.f32 0.0, %v1550
        %v1552 = vpop.f32.mrb[0].mxu0
        %v1553 = vpop.f32.mrb[0].mxu0
        %v1554 = vadd.f32 0.0, %v1553
        %v1555 = vpop.f32.mrb[0].mxu0
        %1556 = vmatprep.mubr.bf16.mxu0 0
        %1557 = vmatmul.mubr.bf16.gmra.mrb[0].mxu0 %v1463
        %v1558 = vpop.f32.mrb[0].mxu0
        %v1559 = vadd.f32 0.0, %v1558
        %v1560 = vpop.f32.mrb[0].mxu0
        %v1561 = vpop.f32.mrb[0].mxu0
        %v1562 = vadd.f32 0.0, %v1561
        %v1563 = vpop.f32.mrb[0].mxu0
        %1564 = vdwg.mxu0
        %v1565 = vadd.f32 %v1183, %v1503
        %v1566 = vadd.f32 %v1184, %v1506
        %v1567 = vadd.f32 %v1185, %v1511
        %v1568 = vadd.f32 %v1186, %v1514
        %v1569 = vadd.f32 %v1187, %v1519
        %v1570 = vadd.f32 %v1188, %v1522
        %v1571 = vadd.f32 %v1189, %v1527
        %v1572 = vadd.f32 %v1190, %v1530
        %v1573 = vadd.f32 %v1191, %v1535
        %v1574 = vadd.f32 %v1192, %v1538
        %v1575 = vadd.f32 %v1193, %v1543
        %v1576 = vadd.f32 %v1194, %v1546
        %v1577 = vadd.f32 %v1195, %v1551
        %v1578 = vadd.f32 %v1196, %v1554
        %v1579 = vadd.f32 %v1197, %v1559
        %v1580 = vadd.f32 %v1198, %v1562
        %v1581 = vld [vmem:[%s1000] sm:$0xe]
        %v1582 = vld [vmem:[%s1000 + $0xc] sm:$0xe]
        %v1583 = vld [vmem:[%s1000 + $0x18] sm:$0xe]
        %v1584 = vld [vmem:[%s1000 + $0x24] sm:$0xe]
        %v1585 = vld [vmem:[%s1000 + $0x30] sm:$0xe]
        %v1586 = vld [vmem:[%s1000 + $0x3c] sm:$0xe]
        %v1587 = vld [vmem:[%s1000 + $0x48] sm:$0xe]
        %v1588 = vld [vmem:[%s1000 + $0x54] sm:$0xe]
        %v1613 = vrot.slane %v1581, 5
        %v1614 = vrot.slane %v1613, 4
        %v1615 = vrot.slane %v1200, 5
        %v1616 = vsel %vm777, %v1614, %v1615
        %v1617 = vrot.slane %v1615, 4
        %v1618 = vrot.slane %v1201, 5
        %v1619 = vsel %vm777, %v1617, %v1618
        %v1620 = vrot.slane %v1582, 5
        %v1621 = vrot.slane %v1620, 4
        %v1622 = vrot.slane %v1203, 5
        %v1623 = vsel %vm777, %v1621, %v1622
        %v1624 = vrot.slane %v1622, 4
        %v1625 = vrot.slane %v1204, 5
        %v1626 = vsel %vm777, %v1624, %v1625
        %v1627 = vrot.slane %v1583, 5
        %v1628 = vrot.slane %v1627, 4
        %v1629 = vrot.slane %v1206, 5
        %v1630 = vsel %vm777, %v1628, %v1629
        %v1631 = vrot.slane %v1629, 4
        %v1632 = vrot.slane %v1207, 5
        %v1633 = vsel %vm777, %v1631, %v1632
        %v1634 = vrot.slane %v1584, 5
        %v1635 = vrot.slane %v1634, 4
        %v1636 = vrot.slane %v1209, 5
        %v1637 = vsel %vm777, %v1635, %v1636
        %v1638 = vrot.slane %v1636, 4
        %v1639 = vrot.slane %v1210, 5
        %v1640 = vsel %vm777, %v1638, %v1639
        %v1641 = vrot.slane %v1585, 5
        %v1642 = vrot.slane %v1641, 4
        %v1643 = vrot.slane %v1212, 5
        %v1644 = vsel %vm777, %v1642, %v1643
        %v1645 = vrot.slane %v1643, 4
        %v1646 = vrot.slane %v1213, 5
        %v1647 = vsel %vm777, %v1645, %v1646
        %v1648 = vrot.slane %v1586, 5
        %v1649 = vrot.slane %v1648, 4
        %v1650 = vrot.slane %v1215, 5
        %v1651 = vsel %vm777, %v1649, %v1650
        %v1652 = vrot.slane %v1650, 4
        %v1653 = vrot.slane %v1216, 5
        %v1654 = vsel %vm777, %v1652, %v1653
        %v1655 = vrot.slane %v1587, 5
        %v1656 = vrot.slane %v1655, 4
        %v1657 = vrot.slane %v1218, 5
        %v1658 = vsel %vm777, %v1656, %v1657
        %v1659 = vrot.slane %v1657, 4
        %v1660 = vrot.slane %v1219, 5
        %v1661 = vsel %vm777, %v1659, %v1660
        %v1662 = vrot.slane %v1588, 5
        %v1663 = vrot.slane %v1662, 4
        %v1664 = vrot.slane %v1221, 5
        %v1665 = vsel %vm777, %v1663, %v1664
        %v1666 = vrot.slane %v1664, 4
        %v1667 = vrot.slane %v1222, 5
        %v1668 = vsel %vm777, %v1666, %v1667
        %s1669 = scalar_lea.vmem %s210, 10
        %v1670 = vld [vmem:[%s1669] sm:$0x3]
        %v1671 = vunpack.c.l.b16 %v1616
        %v1672 = vunpack.c.l.b16 %v1619
        %v1673 = vunpack.c.l.b16 %v1623
        %v1674 = vunpack.c.l.b16 %v1626
        %v1675 = vunpack.c.l.b16 %v1630
        %v1676 = vunpack.c.l.b16 %v1633
        %v1677 = vunpack.c.l.b16 %v1637
        %v1678 = vunpack.c.l.b16 %v1640
        %v1679 = vunpack.c.l.b16 %v1644
        %v1680 = vunpack.c.l.b16 %v1647
        %v1681 = vunpack.c.l.b16 %v1651
        %v1682 = vunpack.c.l.b16 %v1654
        %v1683 = vunpack.c.l.b16 %v1658
        %v1684 = vunpack.c.l.b16 %v1661
        %v1685 = vunpack.c.l.b16 %v1665
        %v1686 = vunpack.c.l.b16 %v1668
        %v1687 = vpack.c.b16 %v1672, %v1671
        %v1688 = vpack.c.b16 %v1674, %v1673
        %v1689 = vpack.c.b16 %v1676, %v1675
        %v1690 = vpack.c.b16 %v1678, %v1677
        %v1691 = vpack.c.b16 %v1680, %v1679
        %v1692 = vpack.c.b16 %v1682, %v1681
        %v1693 = vpack.c.b16 %v1684, %v1683
        %v1694 = vpack.c.b16 %v1686, %v1685
        %v1696 = vsel %vm461, %v1687, 0
        %v1699 = vsel %vm461, %v1688, 0
        %v1702 = vsel %vm461, %v1689, 0
        %v1705 = vsel %vm461, %v1690, 0
        %v1708 = vsel %vm461, %v1691, 0
        %v1711 = vsel %vm461, %v1692, 0
        %v1714 = vsel %vm461, %v1693, 0
        %v1717 = vsel %vm461, %v1694, 0
        %v1720 = vsel %vm486, %v1670, 0
        %1722 = vmatprep.subr.bf16.mxu0 0
        %1723 = vmatpush1.bf16.msra.mxu0 %v1720
        %1724 = vmatprep.subr.bf16.mxu0 0
        %1725 = vmatpush1.bf16.msra.mxu0 0
        %1726 = vmatprep.subr.bf16.mxu0 0
        %1727 = vmatpush1.bf16.msra.mxu0 0
        %1728 = vmatprep.subr.bf16.mxu0 0
        %1729 = vmatpush1.bf16.msra.mxu0 0
        %1730 = vmatprep.subr.bf16.mxu0 0
        %1731 = vmatpush1.bf16.msra.mxu0 0
        %1732 = vmatprep.subr.bf16.mxu0 0
        %1733 = vmatpush1.bf16.msra.mxu0 0
        %1734 = vmatprep.subr.bf16.mxu0 0
        %1735 = vmatpush1.bf16.msra.mxu0 0
        %1736 = vmatprep.subr.bf16.mxu0 0
        %1737 = vmatpush1.bf16.msra.mxu0 0
        %1738 = vmatprep.subr.bf16.mxu0 0
        %1739 = vmatpush1.bf16.msra.mxu0 0
        %1740 = vmatprep.subr.bf16.mxu0 0
        %1741 = vmatpush1.bf16.msra.mxu0 0
        %1742 = vmatprep.subr.bf16.mxu0 0
        %1743 = vmatpush1.bf16.msra.mxu0 0
        %1744 = vmatprep.subr.bf16.mxu0 0
        %1745 = vmatpush1.bf16.msra.mxu0 0
        %1746 = vmatprep.subr.bf16.mxu0 0
        %1747 = vmatpush1.bf16.msra.mxu0 0
        %1748 = vmatprep.subr.bf16.mxu0 0
        %1749 = vmatpush1.bf16.msra.mxu0 0
        %1750 = vmatprep.subr.bf16.mxu0 0
        %1751 = vmatpush1.bf16.msra.mxu0 0
        %1752 = vmatprep.subr.bf16.mxu0 0
        %1753 = vmatpush1.bf16.msra.mxu0 0
        %1754 = vmatprep.mubr.bf16.mxu0 0
        %1755 = vmatmul.mubr.bf16.gmra.mrb[0].mxu0 %v1696
        %v1756 = vpop.f32.mrb[0].mxu0
        %v1757 = vadd.f32 0.0, %v1756
        %v1758 = vpop.f32.mrb[0].mxu0
        %v1759 = vpop.f32.mrb[0].mxu0
        %v1760 = vadd.f32 0.0, %v1759
        %v1761 = vpop.f32.mrb[0].mxu0
        %1762 = vmatprep.mubr.bf16.mxu0 0
        %1763 = vmatmul.mubr.bf16.gmra.mrb[0].mxu0 %v1699
        %v1764 = vpop.f32.mrb[0].mxu0
        %v1765 = vadd.f32 0.0, %v1764
        %v1766 = vpop.f32.mrb[0].mxu0
        %v1767 = vpop.f32.mrb[0].mxu0
        %v1768 = vadd.f32 0.0, %v1767
        %v1769 = vpop.f32.mrb[0].mxu0
        %1770 = vmatprep.mubr.bf16.mxu0 0
        %1771 = vmatmul.mubr.bf16.gmra.mrb[0].mxu0 %v1702
        %v1772 = vpop.f32.mrb[0].mxu0
        %v1773 = vadd.f32 0.0, %v1772
        %v1774 = vpop.f32.mrb[0].mxu0
        %v1775 = vpop.f32.mrb[0].mxu0
        %v1776 = vadd.f32 0.0, %v1775
        %v1777 = vpop.f32.mrb[0].mxu0
        %1778 = vmatprep.mubr.bf16.mxu0 0
        %1779 = vmatmul.mubr.bf16.gmra.mrb[0].mxu0 %v1705
        %v1780 = vpop.f32.mrb[0].mxu0
        %v1781 = vadd.f32 0.0, %v1780
        %v1782 = vpop.f32.mrb[0].mxu0
        %v1783 = vpop.f32.mrb[0].mxu0
        %v1784 = vadd.f32 0.0, %v1783
        %v1785 = vpop.f32.mrb[0].mxu0
        %1786 = vmatprep.mubr.bf16.mxu0 0
        %1787 = vmatmul.mubr.bf16.gmra.mrb[0].mxu0 %v1708
        %v1788 = vpop.f32.mrb[0].mxu0
        %v1789 = vadd.f32 0.0, %v1788
        %v1790 = vpop.f32.mrb[0].mxu0
        %v1791 = vpop.f32.mrb[0].mxu0
        %v1792 = vadd.f32 0.0, %v1791
        %v1793 = vpop.f32.mrb[0].mxu0
        %1794 = vmatprep.mubr.bf16.mxu0 0
        %1795 = vmatmul.mubr.bf16.gmra.mrb[0].mxu0 %v1711
        %v1796 = vpop.f32.mrb[0].mxu0
        %v1797 = vadd.f32 0.0, %v1796
        %v1798 = vpop.f32.mrb[0].mxu0
        %v1799 = vpop.f32.mrb[0].mxu0
        %v1800 = vadd.f32 0.0, %v1799
        %v1801 = vpop.f32.mrb[0].mxu0
        %1802 = vmatprep.mubr.bf16.mxu0 0
        %1803 = vmatmul.mubr.bf16.gmra.mrb[0].mxu0 %v1714
        %v1804 = vpop.f32.mrb[0].mxu0
        %v1805 = vadd.f32 0.0, %v1804
        %v1806 = vpop.f32.mrb[0].mxu0
        %v1807 = vpop.f32.mrb[0].mxu0
        %v1808 = vadd.f32 0.0, %v1807
        %v1809 = vpop.f32.mrb[0].mxu0
        %1810 = vmatprep.mubr.bf16.mxu0 0
        %1811 = vmatmul.mubr.bf16.gmra.mrb[0].mxu0 %v1717
        %v1812 = vpop.f32.mrb[0].mxu0
        %v1813 = vadd.f32 0.0, %v1812
        %v1814 = vpop.f32.mrb[0].mxu0
        %v1815 = vpop.f32.mrb[0].mxu0
        %v1816 = vadd.f32 0.0, %v1815
        %v1817 = vpop.f32.mrb[0].mxu0
        %1818 = vdwg.mxu0
        %v1819 = vadd.f32 %v1565, %v1757
        %v1820 = vadd.f32 %v1566, %v1760
        %v1821 = vadd.f32 %v1567, %v1765
        %v1822 = vadd.f32 %v1568, %v1768
        %v1823 = vadd.f32 %v1569, %v1773
        %v1824 = vadd.f32 %v1570, %v1776
        %v1825 = vadd.f32 %v1571, %v1781
        %v1826 = vadd.f32 %v1572, %v1784
        %v1827 = vadd.f32 %v1573, %v1789
        %v1828 = vadd.f32 %v1574, %v1792
        %v1829 = vadd.f32 %v1575, %v1797
        %v1830 = vadd.f32 %v1576, %v1800
        %v1831 = vadd.f32 %v1577, %v1805
        %v1832 = vadd.f32 %v1578, %v1808
        %v1833 = vadd.f32 %v1579, %v1813
        %v1834 = vadd.f32 %v1580, %v1816
        %s1835 = scalar_lea.vmem %s206, 24
        %v1836 = vld [vmem:[%s1835] sm:$0xf]
        %v1837 = vld [vmem:[%s1835 + $0x4] sm:$0xf]
        %v1838 = vld [vmem:[%s1835 + $0xc] sm:$0xf]
        %v1839 = vld [vmem:[%s1835 + $0x10] sm:$0xf]
        %v1840 = vld [vmem:[%s1835 + $0x18] sm:$0xf]
        %v1841 = vld [vmem:[%s1835 + $0x1c] sm:$0xf]
        %v1842 = vld [vmem:[%s1835 + $0x24] sm:$0xf]
        %v1843 = vld [vmem:[%s1835 + $0x28] sm:$0xf]
        %v1844 = vld [vmem:[%s1835 + $0x30] sm:$0xf]
        %v1845 = vld [vmem:[%s1835 + $0x34] sm:$0xf]
        %v1846 = vld [vmem:[%s1835 + $0x3c] sm:$0xf]
        %v1847 = vld [vmem:[%s1835 + $0x40] sm:$0xf]
        %v1848 = vld [vmem:[%s1835 + $0x48] sm:$0xf]
        %v1849 = vld [vmem:[%s1835 + $0x4c] sm:$0xf]
        %v1850 = vld [vmem:[%s1835 + $0x54] sm:$0xf]
        %v1851 = vld [vmem:[%s1835 + $0x58] sm:$0xf]
        %s1852 = scalar_lea.vmem %s210, 12
        %v1853 = vld [vmem:[%s1852] sm:$0x3]
        %v1870 = vunpack.c.l.b16 %v1836
        %v1871 = vunpack.c.l.b16 %v1837
        %v1872 = vunpack.c.l.b16 %v1838
        %v1873 = vunpack.c.l.b16 %v1839
        %v1874 = vunpack.c.l.b16 %v1840
        %v1875 = vunpack.c.l.b16 %v1841
        %v1876 = vunpack.c.l.b16 %v1842
        %v1877 = vunpack.c.l.b16 %v1843
        %v1878 = vunpack.c.l.b16 %v1844
        %v1879 = vunpack.c.l.b16 %v1845
        %v1880 = vunpack.c.l.b16 %v1846
        %v1881 = vunpack.c.l.b16 %v1847
        %v1882 = vunpack.c.l.b16 %v1848
        %v1883 = vunpack.c.l.b16 %v1849
        %v1884 = vunpack.c.l.b16 %v1850
        %v1885 = vunpack.c.l.b16 %v1851
        %v1886 = vpack.c.b16 %v1871, %v1870
        %v1887 = vpack.c.b16 %v1873, %v1872
        %v1888 = vpack.c.b16 %v1875, %v1874
        %v1889 = vpack.c.b16 %v1877, %v1876
        %v1890 = vpack.c.b16 %v1879, %v1878
        %v1891 = vpack.c.b16 %v1881, %v1880
        %v1892 = vpack.c.b16 %v1883, %v1882
        %v1893 = vpack.c.b16 %v1885, %v1884
        %v1895 = vsel %vm461, %v1886, 0
        %v1898 = vsel %vm461, %v1887, 0
        %v1901 = vsel %vm461, %v1888, 0
        %v1904 = vsel %vm461, %v1889, 0
        %v1907 = vsel %vm461, %v1890, 0
        %v1910 = vsel %vm461, %v1891, 0
        %v1913 = vsel %vm461, %v1892, 0
        %v1916 = vsel %vm461, %v1893, 0
        %v1919 = vsel %vm486, %v1853, 0
        %1921 = vmatprep.subr.bf16.mxu0 0
        %1922 = vmatpush1.bf16.msra.mxu0 %v1919
        %1923 = vmatprep.subr.bf16.mxu0 0
        %1924 = vmatpush1.bf16.msra.mxu0 0
        %1925 = vmatprep.subr.bf16.mxu0 0
        %1926 = vmatpush1.bf16.msra.mxu0 0
        %1927 = vmatprep.subr.bf16.mxu0 0
        %1928 = vmatpush1.bf16.msra.mxu0 0
        %1929 = vmatprep.subr.bf16.mxu0 0
        %1930 = vmatpush1.bf16.msra.mxu0 0
        %1931 = vmatprep.subr.bf16.mxu0 0
        %1932 = vmatpush1.bf16.msra.mxu0 0
        %1933 = vmatprep.subr.bf16.mxu0 0
        %1934 = vmatpush1.bf16.msra.mxu0 0
        %1935 = vmatprep.subr.bf16.mxu0 0
        %1936 = vmatpush1.bf16.msra.mxu0 0
        %1937 = vmatprep.subr.bf16.mxu0 0
        %1938 = vmatpush1.bf16.msra.mxu0 0
        %1939 = vmatprep.subr.bf16.mxu0 0
        %1940 = vmatpush1.bf16.msra.mxu0 0
        %1941 = vmatprep.subr.bf16.mxu0 0
        %1942 = vmatpush1.bf16.msra.mxu0 0
        %1943 = vmatprep.subr.bf16.mxu0 0
        %1944 = vmatpush1.bf16.msra.mxu0 0
        %1945 = vmatprep.subr.bf16.mxu0 0
        %1946 = vmatpush1.bf16.msra.mxu0 0
        %1947 = vmatprep.subr.bf16.mxu0 0
        %1948 = vmatpush1.bf16.msra.mxu0 0
        %1949 = vmatprep.subr.bf16.mxu0 0
        %1950 = vmatpush1.bf16.msra.mxu0 0
        %1951 = vmatprep.subr.bf16.mxu0 0
        %1952 = vmatpush1.bf16.msra.mxu0 0
        %1953 = vmatprep.mubr.bf16.mxu0 0
        %1954 = vmatmul.mubr.bf16.gmra.mrb[0].mxu0 %v1895
        %v1955 = vpop.f32.mrb[0].mxu0
        %v1956 = vadd.f32 0.0, %v1955
        %v1957 = vpop.f32.mrb[0].mxu0
        %v1958 = vpop.f32.mrb[0].mxu0
        %v1959 = vadd.f32 0.0, %v1958
        %v1960 = vpop.f32.mrb[0].mxu0
        %1961 = vmatprep.mubr.bf16.mxu0 0
        %1962 = vmatmul.mubr.bf16.gmra.mrb[0].mxu0 %v1898
        %v1963 = vpop.f32.mrb[0].mxu0
        %v1964 = vadd.f32 0.0, %v1963
        %v1965 = vpop.f32.mrb[0].mxu0
        %v1966 = vpop.f32.mrb[0].mxu0
        %v1967 = vadd.f32 0.0, %v1966
        %v1968 = vpop.f32.mrb[0].mxu0
        %1969 = vmatprep.mubr.bf16.mxu0 0
        %1970 = vmatmul.mubr.bf16.gmra.mrb[0].mxu0 %v1901
        %v1971 = vpop.f32.mrb[0].mxu0
        %v1972 = vadd.f32 0.0, %v1971
        %v1973 = vpop.f32.mrb[0].mxu0
        %v1974 = vpop.f32.mrb[0].mxu0
        %v1975 = vadd.f32 0.0, %v1974
        %v1976 = vpop.f32.mrb[0].mxu0
        %1977 = vmatprep.mubr.bf16.mxu0 0
        %1978 = vmatmul.mubr.bf16.gmra.mrb[0].mxu0 %v1904
        %v1979 = vpop.f32.mrb[0].mxu0
        %v1980 = vadd.f32 0.0, %v1979
        %v1981 = vpop.f32.mrb[0].mxu0
        %v1982 = vpop.f32.mrb[0].mxu0
        %v1983 = vadd.f32 0.0, %v1982
        %v1984 = vpop.f32.mrb[0].mxu0
        %1985 = vmatprep.mubr.bf16.mxu0 0
        %1986 = vmatmul.mubr.bf16.gmra.mrb[0].mxu0 %v1907
        %v1987 = vpop.f32.mrb[0].mxu0
        %v1988 = vadd.f32 0.0, %v1987
        %v1989 = vpop.f32.mrb[0].mxu0
        %v1990 = vpop.f32.mrb[0].mxu0
        %v1991 = vadd.f32 0.0, %v1990
        %v1992 = vpop.f32.mrb[0].mxu0
        %1993 = vmatprep.mubr.bf16.mxu0 0
        %1994 = vmatmul.mubr.bf16.gmra.mrb[0].mxu0 %v1910
        %v1995 = vpop.f32.mrb[0].mxu0
        %v1996 = vadd.f32 0.0, %v1995
        %v1997 = vpop.f32.mrb[0].mxu0
        %v1998 = vpop.f32.mrb[0].mxu0
        %v1999 = vadd.f32 0.0, %v1998
        %v2000 = vpop.f32.mrb[0].mxu0
        %2001 = vmatprep.mubr.bf16.mxu0 0
        %2002 = vmatmul.mubr.bf16.gmra.mrb[0].mxu0 %v1913
        %v2003 = vpop.f32.mrb[0].mxu0
        %v2004 = vadd.f32 0.0, %v2003
        %v2005 = vpop.f32.mrb[0].mxu0
        %v2006 = vpop.f32.mrb[0].mxu0
        %v2007 = vadd.f32 0.0, %v2006
        %v2008 = vpop.f32.mrb[0].mxu0
        %2009 = vmatprep.mubr.bf16.mxu0 0
        %2010 = vmatmul.mubr.bf16.gmra.mrb[0].mxu0 %v1916
        %v2011 = vpop.f32.mrb[0].mxu0
        %v2012 = vadd.f32 0.0, %v2011
        %v2013 = vpop.f32.mrb[0].mxu0
        %v2014 = vpop.f32.mrb[0].mxu0
        %v2015 = vadd.f32 0.0, %v2014
        %v2016 = vpop.f32.mrb[0].mxu0
        %2017 = vdwg.mxu0
        %v2018 = vadd.f32 %v1819, %v1956
        %v2019 = vadd.f32 %v1820, %v1959
        %v2020 = vadd.f32 %v1821, %v1964
        %v2021 = vadd.f32 %v1822, %v1967
        %v2022 = vadd.f32 %v1823, %v1972
        %v2023 = vadd.f32 %v1824, %v1975
        %v2024 = vadd.f32 %v1825, %v1980
        %v2025 = vadd.f32 %v1826, %v1983
        %v2026 = vadd.f32 %v1827, %v1988
        %v2027 = vadd.f32 %v1828, %v1991
        %v2028 = vadd.f32 %v1829, %v1996
        %v2029 = vadd.f32 %v1830, %v1999
        %v2030 = vadd.f32 %v1831, %v2004
        %v2031 = vadd.f32 %v1832, %v2007
        %v2032 = vadd.f32 %v1833, %v2012
        %v2033 = vadd.f32 %v1834, %v2015
        %v2034 = vld [vmem:[%s1835] sm:$0xf]
        %v2035 = vld [vmem:[%s1835 + $0x4] sm:$0xf]
        %v2036 = vld [vmem:[%s1835 + $0x8] sm:$0x1]
        %v2037 = vld [vmem:[%s1835 + $0xc] sm:$0xf]
        %v2038 = vld [vmem:[%s1835 + $0x10] sm:$0xf]
        %v2039 = vld [vmem:[%s1835 + $0x14] sm:$0x1]
        %v2040 = vld [vmem:[%s1835 + $0x18] sm:$0xf]
        %v2041 = vld [vmem:[%s1835 + $0x1c] sm:$0xf]
        %v2042 = vld [vmem:[%s1835 + $0x20] sm:$0x1]
        %v2043 = vld [vmem:[%s1835 + $0x24] sm:$0xf]
        %v2044 = vld [vmem:[%s1835 + $0x28] sm:$0xf]
        %v2045 = vld [vmem:[%s1835 + $0x2c] sm:$0x1]
        %v2046 = vld [vmem:[%s1835 + $0x30] sm:$0xf]
        %v2047 = vld [vmem:[%s1835 + $0x34] sm:$0xf]
        %v2048 = vld [vmem:[%s1835 + $0x38] sm:$0x1]
        %v2049 = vld [vmem:[%s1835 + $0x3c] sm:$0xf]
        %v2050 = vld [vmem:[%s1835 + $0x40] sm:$0xf]
        %v2051 = vld [vmem:[%s1835 + $0x44] sm:$0x1]
        %v2052 = vld [vmem:[%s1835 + $0x48] sm:$0xf]
        %v2053 = vld [vmem:[%s1835 + $0x4c] sm:$0xf]
        %v2054 = vld [vmem:[%s1835 + $0x50] sm:$0x1]
        %v2055 = vld [vmem:[%s1835 + $0x54] sm:$0xf]
        %v2056 = vld [vmem:[%s1835 + $0x58] sm:$0xf]
        %v2057 = vld [vmem:[%s1835 + $0x5c] sm:$0x1]
        %v2059 = vshrl.u32 %v2034, 16
        %v2061 = vrot.slane %v2059, 4
        %v2062 = vshll.u32 %v2034, 16
        %v2064 = vrot.slane %v2062, 5
        %v2065 = vor.u32 %v2061, %v2064
        %v2066 = vrot.slane %v2065, 4
        %v2068 = vshll.u32 %v2035, 16
        %v2070 = vrot.slane %v2068, 5
        %v2071 = vsel %vm242, %v2066, %v2070
        %v2072 = vshrl.u32 %v2035, 16
        %v2074 = vrot.slane %v2072, 4
        %v2075 = vor.u32 %v2074, %v2070
        %v2076 = vrot.slane %v2075, 4
        %v2078 = vshll.u32 %v2036, 16
        %v2080 = vrot.slane %v2078, 5
        %v2081 = vsel %vm242, %v2076, %v2080
        %v2083 = vshrl.u32 %v2037, 16
        %v2085 = vrot.slane %v2083, 4
        %v2086 = vshll.u32 %v2037, 16
        %v2088 = vrot.slane %v2086, 5
        %v2089 = vor.u32 %v2085, %v2088
        %v2090 = vrot.slane %v2089, 4
        %v2092 = vshll.u32 %v2038, 16
        %v2094 = vrot.slane %v2092, 5
        %v2095 = vsel %vm242, %v2090, %v2094
        %v2096 = vshrl.u32 %v2038, 16
        %v2098 = vrot.slane %v2096, 4
        %v2099 = vor.u32 %v2098, %v2094
        %v2100 = vrot.slane %v2099, 4
        %v2102 = vshll.u32 %v2039, 16
        %v2104 = vrot.slane %v2102, 5
        %v2105 = vsel %vm242, %v2100, %v2104
        %v2107 = vshrl.u32 %v2040, 16
        %v2109 = vrot.slane %v2107, 4
        %v2110 = vshll.u32 %v2040, 16
        %v2112 = vrot.slane %v2110, 5
        %v2113 = vor.u32 %v2109, %v2112
        %v2114 = vrot.slane %v2113, 4
        %v2116 = vshll.u32 %v2041, 16
        %v2118 = vrot.slane %v2116, 5
        %v2119 = vsel %vm242, %v2114, %v2118
        %v2120 = vshrl.u32 %v2041, 16
        %v2122 = vrot.slane %v2120, 4
        %v2123 = vor.u32 %v2122, %v2118
        %v2124 = vrot.slane %v2123, 4
        %v2126 = vshll.u32 %v2042, 16
        %v2128 = vrot.slane %v2126, 5
        %v2129 = vsel %vm242, %v2124, %v2128
        %v2131 = vshrl.u32 %v2043, 16
        %v2133 = vrot.slane %v2131, 4
        %v2134 = vshll.u32 %v2043, 16
        %v2136 = vrot.slane %v2134, 5
        %v2137 = vor.u32 %v2133, %v2136
        %v2138 = vrot.slane %v2137, 4
        %v2140 = vshll.u32 %v2044, 16
        %v2142 = vrot.slane %v2140, 5
        %v2143 = vsel %vm242, %v2138, %v2142
        %v2144 = vshrl.u32 %v2044, 16
        %v2146 = vrot.slane %v2144, 4
        %v2147 = vor.u32 %v2146, %v2142
        %v2148 = vrot.slane %v2147, 4
        %v2150 = vshll.u32 %v2045, 16
        %v2152 = vrot.slane %v2150, 5
        %v2153 = vsel %vm242, %v2148, %v2152
        %v2155 = vshrl.u32 %v2046, 16
        %v2157 = vrot.slane %v2155, 4
        %v2158 = vshll.u32 %v2046, 16
        %v2160 = vrot.slane %v2158, 5
        %v2161 = vor.u32 %v2157, %v2160
        %v2162 = vrot.slane %v2161, 4
        %v2164 = vshll.u32 %v2047, 16
        %v2166 = vrot.slane %v2164, 5
        %v2167 = vsel %vm242, %v2162, %v2166
        %v2168 = vshrl.u32 %v2047, 16
        %v2170 = vrot.slane %v2168, 4
        %v2171 = vor.u32 %v2170, %v2166
        %v2172 = vrot.slane %v2171, 4
        %v2174 = vshll.u32 %v2048, 16
        %v2176 = vrot.slane %v2174, 5
        %v2177 = vsel %vm242, %v2172, %v2176
        %v2179 = vshrl.u32 %v2049, 16
        %v2181 = vrot.slane %v2179, 4
        %v2182 = vshll.u32 %v2049, 16
        %v2184 = vrot.slane %v2182, 5
        %v2185 = vor.u32 %v2181, %v2184
        %v2186 = vrot.slane %v2185, 4
        %v2188 = vshll.u32 %v2050, 16
        %v2190 = vrot.slane %v2188, 5
        %v2191 = vsel %vm242, %v2186, %v2190
        %v2192 = vshrl.u32 %v2050, 16
        %v2194 = vrot.slane %v2192, 4
        %v2195 = vor.u32 %v2194, %v2190
        %v2196 = vrot.slane %v2195, 4
        %v2198 = vshll.u32 %v2051, 16
        %v2200 = vrot.slane %v2198, 5
        %v2201 = vsel %vm242, %v2196, %v2200
        %v2203 = vshrl.u32 %v2052, 16
        %v2205 = vrot.slane %v2203, 4
        %v2206 = vshll.u32 %v2052, 16
        %v2208 = vrot.slane %v2206, 5
        %v2209 = vor.u32 %v2205, %v2208
        %v2210 = vrot.slane %v2209, 4
        %v2212 = vshll.u32 %v2053, 16
        %v2214 = vrot.slane %v2212, 5
        %v2215 = vsel %vm242, %v2210, %v2214
        %v2216 = vshrl.u32 %v2053, 16
        %v2218 = vrot.slane %v2216, 4
        %v2219 = vor.u32 %v2218, %v2214
        %v2220 = vrot.slane %v2219, 4
        %v2222 = vshll.u32 %v2054, 16
        %v2224 = vrot.slane %v2222, 5
        %v2225 = vsel %vm242, %v2220, %v2224
        %v2227 = vshrl.u32 %v2055, 16
        %v2229 = vrot.slane %v2227, 4
        %v2230 = vshll.u32 %v2055, 16
        %v2232 = vrot.slane %v2230, 5
        %v2233 = vor.u32 %v2229, %v2232
        %v2234 = vrot.slane %v2233, 4
        %v2236 = vshll.u32 %v2056, 16
        %v2238 = vrot.slane %v2236, 5
        %v2239 = vsel %vm242, %v2234, %v2238
        %v2240 = vshrl.u32 %v2056, 16
        %v2242 = vrot.slane %v2240, 4
        %v2243 = vor.u32 %v2242, %v2238
        %v2244 = vrot.slane %v2243, 4
        %v2246 = vshll.u32 %v2057, 16
        %v2248 = vrot.slane %v2246, 5
        %v2249 = vsel %vm242, %v2244, %v2248
        %s2250 = scalar_lea.vmem %s210, 14
        %v2251 = vld [vmem:[%s2250] sm:$0x3]
        %v2252 = vunpack.c.l.b16 %v2071
        %v2253 = vunpack.c.l.b16 %v2081
        %v2254 = vunpack.c.l.b16 %v2095
        %v2255 = vunpack.c.l.b16 %v2105
        %v2256 = vunpack.c.l.b16 %v2119
        %v2257 = vunpack.c.l.b16 %v2129
        %v2258 = vunpack.c.l.b16 %v2143
        %v2259 = vunpack.c.l.b16 %v2153
        %v2260 = vunpack.c.l.b16 %v2167
        %v2261 = vunpack.c.l.b16 %v2177
        %v2262 = vunpack.c.l.b16 %v2191
        %v2263 = vunpack.c.l.b16 %v2201
        %v2264 = vunpack.c.l.b16 %v2215
        %v2265 = vunpack.c.l.b16 %v2225
        %v2266 = vunpack.c.l.b16 %v2239
        %v2267 = vunpack.c.l.b16 %v2249
        %v2268 = vpack.c.b16 %v2253, %v2252
        %v2269 = vpack.c.b16 %v2255, %v2254
        %v2270 = vpack.c.b16 %v2257, %v2256
        %v2271 = vpack.c.b16 %v2259, %v2258
        %v2272 = vpack.c.b16 %v2261, %v2260
        %v2273 = vpack.c.b16 %v2263, %v2262
        %v2274 = vpack.c.b16 %v2265, %v2264
        %v2275 = vpack.c.b16 %v2267, %v2266
        %v2277 = vsel %vm461, %v2268, 0
        %v2280 = vsel %vm461, %v2269, 0
        %v2283 = vsel %vm461, %v2270, 0
        %v2286 = vsel %vm461, %v2271, 0
        %v2289 = vsel %vm461, %v2272, 0
        %v2292 = vsel %vm461, %v2273, 0
        %v2295 = vsel %vm461, %v2274, 0
        %v2298 = vsel %vm461, %v2275, 0
        %v2301 = vsel %vm486, %v2251, 0
        %2303 = vmatprep.subr.bf16.mxu0 0
        %2304 = vmatpush1.bf16.msra.mxu0 %v2301
        %2305 = vmatprep.subr.bf16.mxu0 0
        %2306 = vmatpush1.bf16.msra.mxu0 0
        %2307 = vmatprep.subr.bf16.mxu0 0
        %2308 = vmatpush1.bf16.msra.mxu0 0
        %2309 = vmatprep.subr.bf16.mxu0 0
        %2310 = vmatpush1.bf16.msra.mxu0 0
        %2311 = vmatprep.subr.bf16.mxu0 0
        %2312 = vmatpush1.bf16.msra.mxu0 0
        %2313 = vmatprep.subr.bf16.mxu0 0
        %2314 = vmatpush1.bf16.msra.mxu0 0
        %2315 = vmatprep.subr.bf16.mxu0 0
        %2316 = vmatpush1.bf16.msra.mxu0 0
        %2317 = vmatprep.subr.bf16.mxu0 0
        %2318 = vmatpush1.bf16.msra.mxu0 0
        %2319 = vmatprep.subr.bf16.mxu0 0
        %2320 = vmatpush1.bf16.msra.mxu0 0
        %2321 = vmatprep.subr.bf16.mxu0 0
        %2322 = vmatpush1.bf16.msra.mxu0 0
        %2323 = vmatprep.subr.bf16.mxu0 0
        %2324 = vmatpush1.bf16.msra.mxu0 0
        %2325 = vmatprep.subr.bf16.mxu0 0
        %2326 = vmatpush1.bf16.msra.mxu0 0
        %2327 = vmatprep.subr.bf16.mxu0 0
        %2328 = vmatpush1.bf16.msra.mxu0 0
        %2329 = vmatprep.subr.bf16.mxu0 0
        %2330 = vmatpush1.bf16.msra.mxu0 0
        %2331 = vmatprep.subr.bf16.mxu0 0
        %2332 = vmatpush1.bf16.msra.mxu0 0
        %2333 = vmatprep.subr.bf16.mxu0 0
        %2334 = vmatpush1.bf16.msra.mxu0 0
        %2335 = vmatprep.mubr.bf16.mxu0 0
        %2336 = vmatmul.mubr.bf16.gmra.mrb[0].mxu0 %v2277
        %v2337 = vpop.f32.mrb[0].mxu0
        %v2338 = vadd.f32 0.0, %v2337
        %v2339 = vpop.f32.mrb[0].mxu0
        %v2340 = vpop.f32.mrb[0].mxu0
        %v2341 = vadd.f32 0.0, %v2340
        %v2342 = vpop.f32.mrb[0].mxu0
        %2343 = vmatprep.mubr.bf16.mxu0 0
        %2344 = vmatmul.mubr.bf16.gmra.mrb[0].mxu0 %v2280
        %v2345 = vpop.f32.mrb[0].mxu0
        %v2346 = vadd.f32 0.0, %v2345
        %v2347 = vpop.f32.mrb[0].mxu0
        %v2348 = vpop.f32.mrb[0].mxu0
        %v2349 = vadd.f32 0.0, %v2348
        %v2350 = vpop.f32.mrb[0].mxu0
        %2351 = vmatprep.mubr.bf16.mxu0 0
        %2352 = vmatmul.mubr.bf16.gmra.mrb[0].mxu0 %v2283
        %v2353 = vpop.f32.mrb[0].mxu0
        %v2354 = vadd.f32 0.0, %v2353
        %v2355 = vpop.f32.mrb[0].mxu0
        %v2356 = vpop.f32.mrb[0].mxu0
        %v2357 = vadd.f32 0.0, %v2356
        %v2358 = vpop.f32.mrb[0].mxu0
        %2359 = vmatprep.mubr.bf16.mxu0 0
        %2360 = vmatmul.mubr.bf16.gmra.mrb[0].mxu0 %v2286
        %v2361 = vpop.f32.mrb[0].mxu0
        %v2362 = vadd.f32 0.0, %v2361
        %v2363 = vpop.f32.mrb[0].mxu0
        %v2364 = vpop.f32.mrb[0].mxu0
        %v2365 = vadd.f32 0.0, %v2364
        %v2366 = vpop.f32.mrb[0].mxu0
        %2367 = vmatprep.mubr.bf16.mxu0 0
        %2368 = vmatmul.mubr.bf16.gmra.mrb[0].mxu0 %v2289
        %v2369 = vpop.f32.mrb[0].mxu0
        %v2370 = vadd.f32 0.0, %v2369
        %v2371 = vpop.f32.mrb[0].mxu0
        %v2372 = vpop.f32.mrb[0].mxu0
        %v2373 = vadd.f32 0.0, %v2372
        %v2374 = vpop.f32.mrb[0].mxu0
        %2375 = vmatprep.mubr.bf16.mxu0 0
        %2376 = vmatmul.mubr.bf16.gmra.mrb[0].mxu0 %v2292
        %v2377 = vpop.f32.mrb[0].mxu0
        %v2378 = vadd.f32 0.0, %v2377
        %v2379 = vpop.f32.mrb[0].mxu0
        %v2380 = vpop.f32.mrb[0].mxu0
        %v2381 = vadd.f32 0.0, %v2380
        %v2382 = vpop.f32.mrb[0].mxu0
        %2383 = vmatprep.mubr.bf16.mxu0 0
        %2384 = vmatmul.mubr.bf16.gmra.mrb[0].mxu0 %v2295
        %v2385 = vpop.f32.mrb[0].mxu0
        %v2386 = vadd.f32 0.0, %v2385
        %v2387 = vpop.f32.mrb[0].mxu0
        %v2388 = vpop.f32.mrb[0].mxu0
        %v2389 = vadd.f32 0.0, %v2388
        %v2390 = vpop.f32.mrb[0].mxu0
        %2391 = vmatprep.mubr.bf16.mxu0 0
        %2392 = vmatmul.mubr.bf16.gmra.mrb[0].mxu0 %v2298
        %v2393 = vpop.f32.mrb[0].mxu0
        %v2394 = vadd.f32 0.0, %v2393
        %v2395 = vpop.f32.mrb[0].mxu0
        %v2396 = vpop.f32.mrb[0].mxu0
        %v2397 = vadd.f32 0.0, %v2396
        %v2398 = vpop.f32.mrb[0].mxu0
        %2399 = vdwg.mxu0
        %v2400 = vadd.f32 %v2018, %v2338
        %v2401 = vadd.f32 %v2019, %v2341
        %v2402 = vadd.f32 %v2020, %v2346
        %v2403 = vadd.f32 %v2021, %v2349
        %v2404 = vadd.f32 %v2022, %v2354
        %v2405 = vadd.f32 %v2023, %v2357
        %v2406 = vadd.f32 %v2024, %v2362
        %v2407 = vadd.f32 %v2025, %v2365
        %v2408 = vadd.f32 %v2026, %v2370
        %v2409 = vadd.f32 %v2027, %v2373
        %v2410 = vadd.f32 %v2028, %v2378
        %v2411 = vadd.f32 %v2029, %v2381
        %v2412 = vadd.f32 %v2030, %v2386
        %v2413 = vadd.f32 %v2031, %v2389
        %v2414 = vadd.f32 %v2032, %v2394
        %v2415 = vadd.f32 %v2033, %v2397
        %v2416 = vld [vmem:[%s1835] sm:$0xe]
        %v2417 = vld [vmem:[%s1835 + $0xc] sm:$0xe]
        %v2418 = vld [vmem:[%s1835 + $0x18] sm:$0xe]
        %v2419 = vld [vmem:[%s1835 + $0x24] sm:$0xe]
        %v2420 = vld [vmem:[%s1835 + $0x30] sm:$0xe]
        %v2421 = vld [vmem:[%s1835 + $0x3c] sm:$0xe]
        %v2422 = vld [vmem:[%s1835 + $0x48] sm:$0xe]
        %v2423 = vld [vmem:[%s1835 + $0x54] sm:$0xe]
        %v2448 = vrot.slane %v2416, 5
        %v2449 = vrot.slane %v2448, 4
        %v2450 = vrot.slane %v2035, 5
        %v2451 = vsel %vm777, %v2449, %v2450
        %v2452 = vrot.slane %v2450, 4
        %v2453 = vrot.slane %v2036, 5
        %v2454 = vsel %vm777, %v2452, %v2453
        %v2455 = vrot.slane %v2417, 5
        %v2456 = vrot.slane %v2455, 4
        %v2457 = vrot.slane %v2038, 5
        %v2458 = vsel %vm777, %v2456, %v2457
        %v2459 = vrot.slane %v2457, 4
        %v2460 = vrot.slane %v2039, 5
        %v2461 = vsel %vm777, %v2459, %v2460
        %v2462 = vrot.slane %v2418, 5
        %v2463 = vrot.slane %v2462, 4
        %v2464 = vrot.slane %v2041, 5
        %v2465 = vsel %vm777, %v2463, %v2464
        %v2466 = vrot.slane %v2464, 4
        %v2467 = vrot.slane %v2042, 5
        %v2468 = vsel %vm777, %v2466, %v2467
        %v2469 = vrot.slane %v2419, 5
        %v2470 = vrot.slane %v2469, 4
        %v2471 = vrot.slane %v2044, 5
        %v2472 = vsel %vm777, %v2470, %v2471
        %v2473 = vrot.slane %v2471, 4
        %v2474 = vrot.slane %v2045, 5
        %v2475 = vsel %vm777, %v2473, %v2474
        %v2476 = vrot.slane %v2420, 5
        %v2477 = vrot.slane %v2476, 4
        %v2478 = vrot.slane %v2047, 5
        %v2479 = vsel %vm777, %v2477, %v2478
        %v2480 = vrot.slane %v2478, 4
        %v2481 = vrot.slane %v2048, 5
        %v2482 = vsel %vm777, %v2480, %v2481
        %v2483 = vrot.slane %v2421, 5
        %v2484 = vrot.slane %v2483, 4
        %v2485 = vrot.slane %v2050, 5
        %v2486 = vsel %vm777, %v2484, %v2485
        %v2487 = vrot.slane %v2485, 4
        %v2488 = vrot.slane %v2051, 5
        %v2489 = vsel %vm777, %v2487, %v2488
        %v2490 = vrot.slane %v2422, 5
        %v2491 = vrot.slane %v2490, 4
        %v2492 = vrot.slane %v2053, 5
        %v2493 = vsel %vm777, %v2491, %v2492
        %v2494 = vrot.slane %v2492, 4
        %v2495 = vrot.slane %v2054, 5
        %v2496 = vsel %vm777, %v2494, %v2495
        %v2497 = vrot.slane %v2423, 5
        %v2498 = vrot.slane %v2497, 4
        %v2499 = vrot.slane %v2056, 5
        %v2500 = vsel %vm777, %v2498, %v2499
        %v2501 = vrot.slane %v2499, 4
        %v2502 = vrot.slane %v2057, 5
        %v2503 = vsel %vm777, %v2501, %v2502
        %s2504 = scalar_lea.vmem %s210, 16
        %v2505 = vld [vmem:[%s2504] sm:$0x3]
        %v2506 = vunpack.c.l.b16 %v2451
        %v2507 = vunpack.c.l.b16 %v2454
        %v2508 = vunpack.c.l.b16 %v2458
        %v2509 = vunpack.c.l.b16 %v2461
        %v2510 = vunpack.c.l.b16 %v2465
        %v2511 = vunpack.c.l.b16 %v2468
        %v2512 = vunpack.c.l.b16 %v2472
        %v2513 = vunpack.c.l.b16 %v2475
        %v2514 = vunpack.c.l.b16 %v2479
        %v2515 = vunpack.c.l.b16 %v2482
        %v2516 = vunpack.c.l.b16 %v2486
        %v2517 = vunpack.c.l.b16 %v2489
        %v2518 = vunpack.c.l.b16 %v2493
        %v2519 = vunpack.c.l.b16 %v2496
        %v2520 = vunpack.c.l.b16 %v2500
        %v2521 = vunpack.c.l.b16 %v2503
        %v2522 = vpack.c.b16 %v2507, %v2506
        %v2523 = vpack.c.b16 %v2509, %v2508
        %v2524 = vpack.c.b16 %v2511, %v2510
        %v2525 = vpack.c.b16 %v2513, %v2512
        %v2526 = vpack.c.b16 %v2515, %v2514
        %v2527 = vpack.c.b16 %v2517, %v2516
        %v2528 = vpack.c.b16 %v2519, %v2518
        %v2529 = vpack.c.b16 %v2521, %v2520
        %v2531 = vsel %vm461, %v2522, 0
        %v2534 = vsel %vm461, %v2523, 0
        %v2537 = vsel %vm461, %v2524, 0
        %v2540 = vsel %vm461, %v2525, 0
        %v2543 = vsel %vm461, %v2526, 0
        %v2546 = vsel %vm461, %v2527, 0
        %v2549 = vsel %vm461, %v2528, 0
        %v2552 = vsel %vm461, %v2529, 0
        %v2555 = vsel %vm486, %v2505, 0
        %2557 = vmatprep.subr.bf16.mxu0 0
        %2558 = vmatpush1.bf16.msra.mxu0 %v2555
        %2559 = vmatprep.subr.bf16.mxu0 0
        %2560 = vmatpush1.bf16.msra.mxu0 0
        %2561 = vmatprep.subr.bf16.mxu0 0
        %2562 = vmatpush1.bf16.msra.mxu0 0
        %2563 = vmatprep.subr.bf16.mxu0 0
        %2564 = vmatpush1.bf16.msra.mxu0 0
        %2565 = vmatprep.subr.bf16.mxu0 0
        %2566 = vmatpush1.bf16.msra.mxu0 0
        %2567 = vmatprep.subr.bf16.mxu0 0
        %2568 = vmatpush1.bf16.msra.mxu0 0
        %2569 = vmatprep.subr.bf16.mxu0 0
        %2570 = vmatpush1.bf16.msra.mxu0 0
        %2571 = vmatprep.subr.bf16.mxu0 0
        %2572 = vmatpush1.bf16.msra.mxu0 0
        %2573 = vmatprep.subr.bf16.mxu0 0
        %2574 = vmatpush1.bf16.msra.mxu0 0
        %2575 = vmatprep.subr.bf16.mxu0 0
        %2576 = vmatpush1.bf16.msra.mxu0 0
        %2577 = vmatprep.subr.bf16.mxu0 0
        %2578 = vmatpush1.bf16.msra.mxu0 0
        %2579 = vmatprep.subr.bf16.mxu0 0
        %2580 = vmatpush1.bf16.msra.mxu0 0
        %2581 = vmatprep.subr.bf16.mxu0 0
        %2582 = vmatpush1.bf16.msra.mxu0 0
        %2583 = vmatprep.subr.bf16.mxu0 0
        %2584 = vmatpush1.bf16.msra.mxu0 0
        %2585 = vmatprep.subr.bf16.mxu0 0
        %2586 = vmatpush1.bf16.msra.mxu0 0
        %2587 = vmatprep.subr.bf16.mxu0 0
        %2588 = vmatpush1.bf16.msra.mxu0 0
        %2589 = vmatprep.mubr.bf16.mxu0 0
        %2590 = vmatmul.mubr.bf16.gmra.mrb[0].mxu0 %v2531
        %v2591 = vpop.f32.mrb[0].mxu0
        %v2592 = vadd.f32 0.0, %v2591
        %v2593 = vpop.f32.mrb[0].mxu0
        %v2594 = vpop.f32.mrb[0].mxu0
        %v2595 = vadd.f32 0.0, %v2594
        %v2596 = vpop.f32.mrb[0].mxu0
        %2597 = vmatprep.mubr.bf16.mxu0 0
        %2598 = vmatmul.mubr.bf16.gmra.mrb[0].mxu0 %v2534
        %v2599 = vpop.f32.mrb[0].mxu0
        %v2600 = vadd.f32 0.0, %v2599
        %v2601 = vpop.f32.mrb[0].mxu0
        %v2602 = vpop.f32.mrb[0].mxu0
        %v2603 = vadd.f32 0.0, %v2602
        %v2604 = vpop.f32.mrb[0].mxu0
        %2605 = vmatprep.mubr.bf16.mxu0 0
        %2606 = vmatmul.mubr.bf16.gmra.mrb[0].mxu0 %v2537
        %v2607 = vpop.f32.mrb[0].mxu0
        %v2608 = vadd.f32 0.0, %v2607
        %v2609 = vpop.f32.mrb[0].mxu0
        %v2610 = vpop.f32.mrb[0].mxu0
        %v2611 = vadd.f32 0.0, %v2610
        %v2612 = vpop.f32.mrb[0].mxu0
        %2613 = vmatprep.mubr.bf16.mxu0 0
        %2614 = vmatmul.mubr.bf16.gmra.mrb[0].mxu0 %v2540
        %v2615 = vpop.f32.mrb[0].mxu0
        %v2616 = vadd.f32 0.0, %v2615
        %v2617 = vpop.f32.mrb[0].mxu0
        %v2618 = vpop.f32.mrb[0].mxu0
        %v2619 = vadd.f32 0.0, %v2618
        %v2620 = vpop.f32.mrb[0].mxu0
        %2621 = vmatprep.mubr.bf16.mxu0 0
        %2622 = vmatmul.mubr.bf16.gmra.mrb[0].mxu0 %v2543
        %v2623 = vpop.f32.mrb[0].mxu0
        %v2624 = vadd.f32 0.0, %v2623
        %v2625 = vpop.f32.mrb[0].mxu0
        %v2626 = vpop.f32.mrb[0].mxu0
        %v2627 = vadd.f32 0.0, %v2626
        %v2628 = vpop.f32.mrb[0].mxu0
        %2629 = vmatprep.mubr.bf16.mxu0 0
        %2630 = vmatmul.mubr.bf16.gmra.mrb[0].mxu0 %v2546
        %v2631 = vpop.f32.mrb[0].mxu0
        %v2632 = vadd.f32 0.0, %v2631
        %v2633 = vpop.f32.mrb[0].mxu0
        %v2634 = vpop.f32.mrb[0].mxu0
        %v2635 = vadd.f32 0.0, %v2634
        %v2636 = vpop.f32.mrb[0].mxu0
        %2637 = vmatprep.mubr.bf16.mxu0 0
        %2638 = vmatmul.mubr.bf16.gmra.mrb[0].mxu0 %v2549
        %v2639 = vpop.f32.mrb[0].mxu0
        %v2640 = vadd.f32 0.0, %v2639
        %v2641 = vpop.f32.mrb[0].mxu0
        %v2642 = vpop.f32.mrb[0].mxu0
        %v2643 = vadd.f32 0.0, %v2642
        %v2644 = vpop.f32.mrb[0].mxu0
        %2645 = vmatprep.mubr.bf16.mxu0 0
        %2646 = vmatmul.mubr.bf16.gmra.mrb[0].mxu0 %v2552
        %v2647 = vpop.f32.mrb[0].mxu0
        %v2648 = vadd.f32 0.0, %v2647
        %v2649 = vpop.f32.mrb[0].mxu0
        %v2650 = vpop.f32.mrb[0].mxu0
        %v2651 = vadd.f32 0.0, %v2650
        %v2652 = vpop.f32.mrb[0].mxu0
        %2653 = vdwg.mxu0
        %v2654 = vadd.f32 %v2400, %v2592
        %v2655 = vadd.f32 %v2401, %v2595
        %v2656 = vadd.f32 %v2402, %v2600
        %v2657 = vadd.f32 %v2403, %v2603
        %v2658 = vadd.f32 %v2404, %v2608
        %v2659 = vadd.f32 %v2405, %v2611
        %v2660 = vadd.f32 %v2406, %v2616
        %v2661 = vadd.f32 %v2407, %v2619
        %v2662 = vadd.f32 %v2408, %v2624
        %v2663 = vadd.f32 %v2409, %v2627
        %v2664 = vadd.f32 %v2410, %v2632
        %v2665 = vadd.f32 %v2411, %v2635
        %v2666 = vadd.f32 %v2412, %v2640
        %v2667 = vadd.f32 %v2413, %v2643
        %v2668 = vadd.f32 %v2414, %v2648
        %v2669 = vadd.f32 %v2415, %v2651
        %v2670 = vld [vmem:[%s213] sm:$0x1]
        %v2672 = vlaneseq
        %v2673 = vshrl.u32 %v2672, 7
        %v2674 = vsub.s32 0, %v2673
        %v2675 = vrot.slane %v2670, %v2674
        %v2677 = vadd.f32 %v2654, %v2675
        %v2678 = vadd.f32 %v2655, %v2675
        %v2679 = vadd.f32 %v2656, %v2675
        %v2680 = vadd.f32 %v2657, %v2675
        %v2681 = vadd.f32 %v2658, %v2675
        %v2682 = vadd.f32 %v2659, %v2675
        %v2683 = vadd.f32 %v2660, %v2675
        %v2684 = vadd.f32 %v2661, %v2675
        %v2685 = vadd.f32 %v2662, %v2675
        %v2686 = vadd.f32 %v2663, %v2675
        %v2687 = vadd.f32 %v2664, %v2675
        %v2688 = vadd.f32 %v2665, %v2675
        %v2689 = vadd.f32 %v2666, %v2675
        %v2690 = vadd.f32 %v2667, %v2675
        %v2691 = vadd.f32 %v2668, %v2675
        %v2692 = vadd.f32 %v2669, %v2675
        %vm2693 = vcmp.ge.f32.partialorder %v2677, 0.0
        %vm2694 = vcmp.ge.f32.partialorder %v2678, 0.0
        %vm2695 = vcmp.ge.f32.partialorder %v2679, 0.0
        %vm2696 = vcmp.ge.f32.partialorder %v2680, 0.0
        %vm2697 = vcmp.ge.f32.partialorder %v2681, 0.0
        %vm2698 = vcmp.ge.f32.partialorder %v2682, 0.0
        %vm2699 = vcmp.ge.f32.partialorder %v2683, 0.0
        %vm2700 = vcmp.ge.f32.partialorder %v2684, 0.0
        %vm2701 = vcmp.ge.f32.partialorder %v2685, 0.0
        %vm2702 = vcmp.ge.f32.partialorder %v2686, 0.0
        %vm2703 = vcmp.ge.f32.partialorder %v2687, 0.0
        %vm2704 = vcmp.ge.f32.partialorder %v2688, 0.0
        %vm2705 = vcmp.ge.f32.partialorder %v2689, 0.0
        %vm2706 = vcmp.ge.f32.partialorder %v2690, 0.0
        %vm2707 = vcmp.ge.f32.partialorder %v2691, 0.0
        %vm2708 = vcmp.ge.f32.partialorder %v2692, 0.0
        %v2709 = vmul.f32 %v2677, 0.0
        %v2710 = vmul.f32 %v2678, 0.0
        %v2711 = vmul.f32 %v2679, 0.0
        %v2712 = vmul.f32 %v2680, 0.0
        %v2713 = vmul.f32 %v2681, 0.0
        %v2714 = vmul.f32 %v2682, 0.0
        %v2715 = vmul.f32 %v2683, 0.0
        %v2716 = vmul.f32 %v2684, 0.0
        %v2717 = vmul.f32 %v2685, 0.0
        %v2718 = vmul.f32 %v2686, 0.0
        %v2719 = vmul.f32 %v2687, 0.0
        %v2720 = vmul.f32 %v2688, 0.0
        %v2721 = vmul.f32 %v2689, 0.0
        %v2722 = vmul.f32 %v2690, 0.0
        %v2723 = vmul.f32 %v2691, 0.0
        %v2724 = vmul.f32 %v2692, 0.0
        %v2725 = vsel %vm2693, %v2677, %v2709
        %v2726 = vsel %vm2694, %v2678, %v2710
        %v2727 = vsel %vm2695, %v2679, %v2711
        %v2728 = vsel %vm2696, %v2680, %v2712
        %v2729 = vsel %vm2697, %v2681, %v2713
        %v2730 = vsel %vm2698, %v2682, %v2714
        %v2731 = vsel %vm2699, %v2683, %v2715
        %v2732 = vsel %vm2700, %v2684, %v2716
        %v2733 = vsel %vm2701, %v2685, %v2717
        %v2734 = vsel %vm2702, %v2686, %v2718
        %v2735 = vsel %vm2703, %v2687, %v2719
        %v2736 = vsel %vm2704, %v2688, %v2720
        %v2737 = vsel %vm2705, %v2689, %v2721
        %v2738 = vsel %vm2706, %v2690, %v2722
        %v2739 = vsel %vm2707, %v2691, %v2723
        %v2740 = vsel %vm2708, %v2692, %v2724
        %2741 = vst [vmem:[%s201] sm:$0xff] %v2725
        %2742 = vst [vmem:[%s201 + $0x8] sm:$0xff] %v2726
        %2743 = vst [vmem:[%s201 + $0x10] sm:$0xff] %v2727
        %2744 = vst [vmem:[%s201 + $0x18] sm:$0xff] %v2728
        %2745 = vst [vmem:[%s201 + $0x20] sm:$0xff] %v2729
        %2746 = vst [vmem:[%s201 + $0x28] sm:$0xff] %v2730
        %2747 = vst [vmem:[%s201 + $0x30] sm:$0xff] %v2731
        %2748 = vst [vmem:[%s201 + $0x38] sm:$0xff] %v2732
        %2749 = vst [vmem:[%s201 + $0x40] sm:$0xff] %v2733
        %2750 = vst [vmem:[%s201 + $0x48] sm:$0xff] %v2734
        %2751 = vst [vmem:[%s201 + $0x50] sm:$0xff] %v2735
        %2752 = vst [vmem:[%s201 + $0x58] sm:$0xff] %v2736
        %2753 = vst [vmem:[%s201 + $0x60] sm:$0xff] %v2737
        %2754 = vst [vmem:[%s201 + $0x68] sm:$0xff] %v2738
        %2755 = vst [vmem:[%s201 + $0x70] sm:$0xff] %v2739
        %2756 = vst [vmem:[%s201 + $0x78] sm:$0xff] %v2740
        %s2757 = sand.u32 %s117, 1
        %s2758 = scalar_lea.sflag [#allocation3], %s2757
        %s2759 = sand.u32 %s117, 1
        %s2760 = smul.addr %s2759, 128
        %s2761 = scalar_lea.vmem [#allocation2], %s2760
        // Predicated region
        $region33: #{tpu_custom_call.1} parent=31 // pred_check
          %p2762 = pneg %p127
        $region34: #{tpu_custom_call.1} parent=31 // pred_check_branch
          %2764 = sbr.rel (%p2762) target = $region36
        $region35: #{tpu_custom_call.1} parent=31 // pred_region
          %s2766 = ssub.s32 2048, 2048
          %2767 = vsyncadd %s2758, %s2766
          %s2768 = smul.addr %s21, 16
          %s2769 = sadd.s32 %s22, %s2768
          %s2770 = smul.addr %s2769, 128
          %s2771 = scalar_lea.hbm %s3, %s2770
          %s2772 = sshll.u32 %s2761, 4
          %s2773 = int_to_ptr.vmem [resolvable:$true] %s2772
          %2778 = dma.vmem_to_hbm [thread:$0]  %s2773, 2048, %s2771, %s2758, 128, 128, 8
        $region36: #{tpu_custom_call.1} parent=31 // pred_fallthru
          _
      $region32: #{tpu_custom_call.1} parent=5 // pred_fallthru
        _
      %p2779 = scmp.le.s32.totalorder 2, %s12
      // Predicated region
      $region37: #{tpu_custom_call.1} parent=5 // pred_check
        %p2780 = pneg %p2779
      $region38: #{tpu_custom_call.1} parent=5 // pred_check_branch
        %2782 = sbr.rel (%p2780) target = $region40
      $region39: #{tpu_custom_call.1} parent=5 // pred_region
        %s2783 = ssub.s32 %s12, 2
        // Predicated region
        $region41: #{tpu_custom_call.1} parent=39 // pred_check
          %p2784 = pneg %p133
        $region42: #{tpu_custom_call.1} parent=39 // pred_check_branch
          %2786 = sbr.rel (%p2784) target = $region44
        $region43: #{tpu_custom_call.1} parent=39 // pred_region
          %s2787 = sand.u32 %s118, 1
          %s2788 = scalar_lea.sflag [#allocation3], %s2787
          %s2789 = sand.u32 %s118, 1
          %s2790 = smul.addr %s2789, 128
          %s2791 = scalar_lea.vmem [#allocation2], %s2790
          %2792 = dma.done %s2788, 2048
        $region44: #{tpu_custom_call.1} parent=39 // pred_fallthru
          _
      $region40: #{tpu_custom_call.1} parent=5 // pred_fallthru
        _
    $region6: #{tpu_custom_call.1} parent=1 // loop_footer
      %s16 = sadd.s32 1, %s12
    $region7: #{tpu_custom_call.1} parent=1 // loop_footer_branch
      %11 = sbr.rel target = $region3
    $region8: #{tpu_custom_call.1} parent=1 // loop_exit
      _
    %2793 = vsyncpa [#allocation3], 1
    %s2794 = scalar_lea.sflag [#allocation3], 1
    %2795 = vsyncpa %s2794, 1

</llo_original>
